<compile_context>
chip_gen: v6e
topology: v6e:2x2x1
jax: 0.10.0
libtpu: 0.0.40
codegen_flags: <defaults>
</compile_context>

<pallas_src>
import jax
import jax.numpy as jnp
from jax.experimental import pallas as pl
from jax.experimental.pallas import tpu as pltpu

# ---- module hyper-parameters ------------------------------------------------------------
IN_CH = 4
BOTTLENECK = 16
NB_FILTERS = 32
KSS = (60, 30, 15)                                   # kernel_size=60 -> [60, 30, 15]
LEFT_PADS = tuple((k - 1) // 2 for k in KSS)         # (29, 14, 7)  PyTorch 'same' left pad
MAX_LEFT = max(LEFT_PADS)                            # 29
MAX_RIGHT = max(k - 1 - p for k, p in zip(KSS, LEFT_PADS))   # 30
HALO = MAX_LEFT + MAX_RIGHT                          # 59
TAP_BASES = tuple(MAX_LEFT - p for p in LEFT_PADS)   # (0, 15, 22) tap offset in the stack
K_TAPS = KSS[0]                                      # 60 tap slots in the im2col stack
CONV_K = K_TAPS * IN_CH                              # 240 stack columns used by the convs
STACK_K = 256                                        # K padded to 2 full 128-lane groups
TAPS_PER_GROUP = 128 // IN_CH                        # 32 taps per lane-dense 128-col store
BRANCH_OUT = 3 * NB_FILTERS                          # 96
C_OUT = 4 * NB_FILTERS                               # 128 (exactly one vreg lane width)
MP_K = 5
MP_PAD = 2
BN_EPS = 1e-5


def _inception_body_kernel(x_ref, wbig_ref, bias_ref,
                           inc_ref, sum_ref, sq_ref,
                           padx_ref, padm_ref, stk_ref):
    # One grid step processes N_TILE batch elements in transposed (length, channel) layout
    # and evaluates the whole inception unit as a single MXU matmul:
    #   x_ref   : (NT, L, 4)   f32   raw input slab
    #   wbig_ref: (256, 128)   bf16  folded im2col weight (3 convs + maxpool 1x1)
    #   bias_ref: (NT*L, 128)  f32   per-position bias (bottleneck-bias edge terms included)
    #   inc_ref : (NT*L, 128)  f32   pre-BN activation;  sum/sq: (1, 128) partial BN stats
    #   padx_ref: (NT, L+59, 4) f32  zero-padded input (conv taps)
    #   padm_ref: (NT, L+4, 4)  f32  -inf-padded input (maxpool)
    #   stk_ref : (NT*L, 256)  bf16  im2col stack
    n_tile, length, c_in = x_ref.shape

    for e in range(n_tile):
        xe = x_ref[e]                                          # (L, 4) f32
        # zero-padded copy for the 'same' convolutions (margins rewritten every step).
        padx_ref[e, 0:MAX_LEFT, :] = jnp.zeros((MAX_LEFT, c_in), jnp.float32)
        padx_ref[e, MAX_LEFT + length:MAX_LEFT + length + MAX_RIGHT, :] = (
            jnp.zeros((MAX_RIGHT, c_in), jnp.float32))
        padx_ref[e, MAX_LEFT:MAX_LEFT + length, :] = xe
        # -inf padded copy for MaxPool1d(5, stride=1, padding=2)
        padm_ref[e, 0:MP_PAD, :] = jnp.full((MP_PAD, c_in), -jnp.inf, jnp.float32)
        padm_ref[e, MP_PAD + length:MP_PAD + length + MP_PAD, :] = jnp.full(
            (MP_PAD, c_in), -jnp.inf, jnp.float32)
        padm_ref[e, MP_PAD:MP_PAD + length, :] = xe

    for e in range(n_tile):
        r0 = e * length
        # group 0: taps 0..31 -> one lane-dense 128-column bf16 store
        g0 = jnp.concatenate(
            [padx_ref[e, m:m + length, :] for m in range(TAPS_PER_GROUP)], axis=1)
        stk_ref[r0:r0 + length, 0:128] = g0.astype(jnp.bfloat16)
        # maxpool(5, stride 1, pad 2) on the raw input
        mp = padm_ref[e, 0:length, :]
        for t in range(1, MP_K):
            mp = jnp.maximum(mp, padm_ref[e, t:t + length, :])
        # group 1: taps 32..59, then the 4 maxpooled channels, then zero-pad to 128 lanes
        parts = [padx_ref[e, m:m + length, :] for m in range(TAPS_PER_GROUP, K_TAPS)]
        parts.append(mp)
        parts.append(jnp.zeros((length, STACK_K - CONV_K - IN_CH), jnp.float32))
        g1 = jnp.concatenate(parts, axis=1)
        stk_ref[r0:r0 + length, 128:STACK_K] = g1.astype(jnp.bfloat16)

    # Whole unit (3 'same' convs with the bottleneck folded in + maxpool 1x1) in ONE matmul.
    acc = jnp.dot(stk_ref[...], wbig_ref[...], preferred_element_type=jnp.float32)
    inc = acc + bias_ref[...]                                  # (NT*L, 128) f32
    inc_ref[...] = inc
    sum_ref[...] = jnp.sum(inc, axis=0, keepdims=True)
    sq_ref[...] = jnp.sum(inc * inc, axis=0, keepdims=True)


def _bn_relu_kernel(inc_ref, scale_ref, shift_ref, out_ref):
    # Folded BatchNorm1d (training-mode batch stats) + ReLU over large flattened row tiles;
    # writes in place over inc via input_output_aliases.
    out_ref[...] = jnp.maximum(inc_ref[...] * scale_ref[...] + shift_ref[...], 0.0)


def _build_big_weight(bw, w0, w1, w2, cw):
    # Fold bottleneck (16,4) into each per-tap conv weight and append the maxpool 1x1 weight:
    #   wbig[4*(base_i+t)+c, 32*i+o] = sum_mid bw[mid,c] * w_i[o,mid,t]
    #   wbig[240+c, 96+o]            = cw[o,c]
    blocks = []
    for w, k, base in zip((w0, w1, w2), KSS, TAP_BASES):
        fw = jnp.einsum('mc,omt->tco', bw, w)                     # (k, 4, 32)
        blk = jnp.zeros((K_TAPS, IN_CH, NB_FILTERS), jnp.float32)
        blk = blk.at[base:base + k].set(fw)
        blocks.append(blk.reshape(K_TAPS * IN_CH, NB_FILTERS))    # (240, 32)
    wconv = jnp.concatenate(blocks, axis=1)                       # (240, 96)
    wbig = jnp.zeros((STACK_K, C_OUT), jnp.float32)
    wbig = wbig.at[:CONV_K, :BRANCH_OUT].set(wconv)
    wbig = wbig.at[CONV_K:CONV_K + IN_CH, BRANCH_OUT:].set(jnp.transpose(cw))
    return wbig


def _build_position_bias(bb, w0, b0, w1, b1, w2, b2, cb, length):
    # Exact per-position bias: the conv branches see the bottleneck bias only at taps that
    # land inside the unpadded sequence (the 'same' zero padding is applied to the
    # bottleneck OUTPUT), so edge rows get fewer bias taps. The maxpool-branch bias is flat.
    j = jnp.arange(length)[:, None]
    m = jnp.arange(K_TAPS)[None, :]
    pos = j + m - MAX_LEFT
    valid = ((pos >= 0) & (pos < length)).astype(jnp.float32)     # (L, 60)
    cols = []
    for w, b, k, base in zip((w0, w1, w2), (b0, b1, b2), KSS, TAP_BASES):
        tapb = jnp.einsum('omt,m->to', w, bb)                     # (k, 32)
        full = jnp.zeros((K_TAPS, NB_FILTERS), jnp.float32).at[base:base + k].set(tapb)
        cols.append(valid @ full + b[None, :])                    # (L, 32)
    conv_bias = jnp.concatenate(cols, axis=1)                     # (L, 96)
    mp_bias = jnp.broadcast_to(cb[None, :], (length, NB_FILTERS)) # (L, 32)
    return jnp.concatenate([conv_bias, mp_bias], axis=1).astype(jnp.float32)   # (L, 128)


def _pick_n_tile(n, length, target_rows=512, max_rows=4096):
    n_tile = 1
    for cand in range(1, n + 1):
        if n % cand == 0 and cand * length <= max_rows:
            n_tile = cand
            if cand * length >= target_rows:
                break
    return n_tile


def _pick_rows_tile(total, target_rows=512, max_rows=2048):
    rows = 1
    for cand in range(1, total + 1):
        if total % cand == 0 and cand <= max_rows:
            rows = cand
            if cand >= target_rows:
                break
    return rows


@jax.jit
def inception_forward(x, params):
    N, C, L = x.shape
    bw, bb, w0, b0, w1, b1, w2, b2, cw, cb, gamma, beta = params

    # Work in (length, channel) layout so the 128-channel output is lane-dense; the input
    # transpose is wrapper-side layout plumbing.
    xt = jnp.transpose(x, (0, 2, 1)).astype(jnp.float32)          # (N, L, C_in)

    n_tile = _pick_n_tile(N, L)
    rows = n_tile * L
    total = N * L
    num_steps = N // n_tile

    wbig = _build_big_weight(bw, w0, w1, w2, cw).astype(jnp.bfloat16)         # (256, 128)
    bias_rows = jnp.tile(_build_position_bias(bb, w0, b0, w1, b1, w2, b2, cb, L),
                         (n_tile, 1))                                         # (rows, 128)

    inc, sums, sumsq = pl.pallas_call(
        _inception_body_kernel,
        grid=(num_steps,),
        in_specs=[
            pl.BlockSpec((n_tile, L, C), lambda b: (b, 0, 0)),
            pl.BlockSpec((STACK_K, C_OUT), lambda b: (0, 0)),
            pl.BlockSpec((rows, C_OUT), lambda b: (0, 0)),
        ],
        out_specs=(
            pl.BlockSpec((rows, C_OUT), lambda b: (b, 0)),
            pl.BlockSpec((1, C_OUT), lambda b: (b, 0)),
            pl.BlockSpec((1, C_OUT), lambda b: (b, 0)),
        ),
        out_shape=(
            jax.ShapeDtypeStruct((total, C_OUT), jnp.float32),
            jax.ShapeDtypeStruct((num_steps, C_OUT), jnp.float32),
            jax.ShapeDtypeStruct((num_steps, C_OUT), jnp.float32),
        ),
        scratch_shapes=[
            pltpu.VMEM((n_tile, L + HALO, C), jnp.float32),       # zero-padded input
            pltpu.VMEM((n_tile, L + 2 * MP_PAD, C), jnp.float32), # -inf padded input
            pltpu.VMEM((rows, STACK_K), jnp.bfloat16),            # bf16 im2col stack
        ],
        compiler_params=pltpu.CompilerParams(dimension_semantics=("parallel",)),
    )(xt, wbig, bias_rows)

    # BatchNorm1d (training mode): biased batch statistics over (N, L), eps=1e-5. Finish the
    # tiny reduction of the per-step partials here; clamp the variance at 0 (E[x^2]-E[x]^2
    # cancellation guard).
    count = jnp.float32(total)
    mean = jnp.sum(sums, axis=0) / count
    var = jnp.maximum(jnp.sum(sumsq, axis=0) / count - mean * mean, 0.0)
    inv = 1.0 / jnp.sqrt(var + BN_EPS)
    scale = (gamma * inv).reshape(1, C_OUT).astype(jnp.float32)
    shift = (beta - mean * gamma * inv).reshape(1, C_OUT).astype(jnp.float32)

    rows_tile = _pick_rows_tile(total)
    out_flat = pl.pallas_call(
        _bn_relu_kernel,
        grid=(total // rows_tile,),
        in_specs=[
            pl.BlockSpec((rows_tile, C_OUT), lambda r: (r, 0)),
            pl.BlockSpec((1, C_OUT), lambda r: (0, 0)),
            pl.BlockSpec((1, C_OUT), lambda r: (0, 0)),
        ],
        out_specs=pl.BlockSpec((rows_tile, C_OUT), lambda r: (r, 0)),
        out_shape=jax.ShapeDtypeStruct((total, C_OUT), jnp.float32),
        input_output_aliases={0: 0},                   # BN+ReLU writes in place over inc
        compiler_params=pltpu.CompilerParams(dimension_semantics=("parallel",)),
    )(inc, scale, shift)

    # TODO(synk): the final NCL transpose is kept only for parity with the PyTorch module's
    # output layout; a stacked InceptionBlock would keep (N, L, C) between units and drop it.
    return jnp.transpose(out_flat.reshape(N, L, C_OUT), (0, 2, 1))   # (N, 128, L)


def init_params(key, in_channels=IN_CH):
    # Deterministic synthetic parameters in PyTorch layouts (Conv1d weight (C_out, C_in, k);
    # the k=1 convs are squeezed to (C_out, C_in)).
    ks = jax.random.split(key, 12)
    rnd = lambda k, shape, s=0.1: s * jax.random.normal(k, shape, jnp.float32)
    bw = rnd(ks[0], (BOTTLENECK, in_channels))               # bottleneck 1x1 weight
    bb = rnd(ks[1], (BOTTLENECK,))                           # bottleneck bias
    w0 = rnd(ks[2], (NB_FILTERS, BOTTLENECK, KSS[0]))        # conv k=60
    b0 = rnd(ks[3], (NB_FILTERS,))
    w1 = rnd(ks[4], (NB_FILTERS, BOTTLENECK, KSS[1]))        # conv k=30
    b1 = rnd(ks[5], (NB_FILTERS,))
    w2 = rnd(ks[6], (NB_FILTERS, BOTTLENECK, KSS[2]))        # conv k=15
    b2 = rnd(ks[7], (NB_FILTERS,))
    cw = rnd(ks[8], (NB_FILTERS, in_channels))               # post-maxpool 1x1 weight
    cb = rnd(ks[9], (NB_FILTERS,))
    gamma = 1.0 + 0.1 * jax.random.normal(ks[10], (C_OUT,), jnp.float32)
    beta = 0.1 * jax.random.normal(ks[11], (C_OUT,), jnp.float32)
    return (bw, bb, w0, b0, w1, b1, w2, b2, cw, cb, gamma, beta)


if __name__ == "__main__":
    key = jax.random.PRNGKey(0)
    kx, kp = jax.random.split(key)
    N, C, L = 2, IN_CH, 16
    x = jax.random.normal(kx, (N, C, L), jnp.float32)
    params = init_params(kp)
    out = inception_forward(x, params)
    out = jax.block_until_ready(out)
    assert out.shape == (N, C_OUT, L) and out.dtype == jnp.float32
    assert bool(jnp.all(out >= 0.0))  # ReLU output
    print("KERNEL_OK")
</pallas_src>

<mosaic_0001>
module attributes {stable_mosaic.version = 11 : i64} {
  func.func @_bn_relu_kernel(%arg0: i32, %arg1: memref<32x128xf32, #tpu.memory_space<vmem>>, %arg2: memref<1x128xf32, #tpu.memory_space<vmem>>, %arg3: memref<1x128xf32, #tpu.memory_space<vmem>>, %arg4: memref<32x128xf32, #tpu.memory_space<vmem>>) attributes {dimension_semantics = [#tpu.dimension_semantics<parallel>], iteration_bounds = array<i64: 1>, scalar_prefetch = 0 : i64, scratch_operands = 0 : i64, tpu.core_type = #tpu.core_type<tc>, window_params = [{transform_indices = @transform_0, window_bounds = array<i64: 32, 128>}, {pipeline_mode = #tpu.pipeline_mode<synchronous>, transform_indices = @transform_1, window_bounds = array<i64: 1, 128>}, {pipeline_mode = #tpu.pipeline_mode<synchronous>, transform_indices = @transform_2, window_bounds = array<i64: 1, 128>}, {transform_indices = @transform_3, window_bounds = array<i64: 32, 128>}]} {
    %c0 = arith.constant 0 : index
    %c0_0 = arith.constant 0 : index
    %0 = vector.load %arg1[%c0, %c0_0] : memref<32x128xf32, #tpu.memory_space<vmem>>, vector<32x128xf32>
    %c0_1 = arith.constant 0 : index
    %c0_2 = arith.constant 0 : index
    %1 = vector.load %arg2[%c0_1, %c0_2] : memref<1x128xf32, #tpu.memory_space<vmem>>, vector<1x128xf32>
    %2 = vector.broadcast %1 : vector<1x128xf32> to vector<32x128xf32>
    %3 = arith.mulf %0, %2 : vector<32x128xf32>
    %c0_3 = arith.constant 0 : index
    %c0_4 = arith.constant 0 : index
    %4 = vector.load %arg3[%c0_3, %c0_4] : memref<1x128xf32, #tpu.memory_space<vmem>>, vector<1x128xf32>
    %5 = vector.broadcast %4 : vector<1x128xf32> to vector<32x128xf32>
    %6 = arith.addf %3, %5 : vector<32x128xf32>
    %cst = arith.constant 0.000000e+00 : f32
    %7 = vector.broadcast %cst : f32 to vector<32x128xf32>
    %8 = arith.maximumf %6, %7 : vector<32x128xf32>
    %c0_5 = arith.constant 0 : index
    %c0_6 = arith.constant 0 : index
    %9 = vector.load %arg4[%c0_5, %c0_6] : memref<32x128xf32, #tpu.memory_space<vmem>>, vector<32x128xf32>
    tpu.vector_store %arg4[%c0_5, %c0_6], %8 {strides = array<i32>} : memref<32x128xf32, #tpu.memory_space<vmem>>, vector<32x128xf32>,
    return
  }
  func.func @transform_0(%arg0: i32) -> (i32, i32) {
    %c0_i32 = arith.constant 0 : i32
    %c0_i32_0 = arith.constant 0 : i32
    return %arg0, %c0_i32 : i32, i32
  }
  func.func @transform_1(%arg0: i32) -> (i32, i32) {
    %c0_i32 = arith.constant 0 : i32
    %c0_i32_0 = arith.constant 0 : i32
    %c0_i32_1 = arith.constant 0 : i32
    return %c0_i32, %c0_i32_0 : i32, i32
  }
  func.func @transform_2(%arg0: i32) -> (i32, i32) {
    %c0_i32 = arith.constant 0 : i32
    %c0_i32_0 = arith.constant 0 : i32
    %c0_i32_1 = arith.constant 0 : i32
    return %c0_i32, %c0_i32_0 : i32, i32
  }
  func.func @transform_3(%arg0: i32) -> (i32, i32) {
    %c0_i32 = arith.constant 0 : i32
    %c0_i32_0 = arith.constant 0 : i32
    return %arg0, %c0_i32 : i32, i32
  }
}

module attributes {stable_mosaic.version = 11 : i64} {
  func.func @_inception_body_kernel(%arg0: i32, %arg1: memref<2x16x4xf32, #tpu.memory_space<vmem>>, %arg2: memref<256x128xbf16, #tpu.memory_space<vmem>>, %arg3: memref<32x128xf32, #tpu.memory_space<vmem>>, %arg4: memref<32x128xf32, #tpu.memory_space<vmem>>, %arg5: memref<1x128xf32, #tpu.memory_space<vmem>>, %arg6: memref<1x128xf32, #tpu.memory_space<vmem>>, %arg7: memref<2x75x4xf32, #tpu.memory_space<vmem>>, %arg8: memref<2x20x4xf32, #tpu.memory_space<vmem>>, %arg9: memref<32x256xbf16, #tpu.memory_space<vmem>>) attributes {dimension_semantics = [#tpu.dimension_semantics<parallel>], iteration_bounds = array<i64: 1>, scalar_prefetch = 0 : i64, scratch_operands = 3 : i64, tpu.core_type = #tpu.core_type<tc>, window_params = [{transform_indices = @transform_0, window_bounds = array<i64: 2, 16, 4>}, {pipeline_mode = #tpu.pipeline_mode<synchronous>, transform_indices = @transform_1, window_bounds = array<i64: 256, 128>}, {pipeline_mode = #tpu.pipeline_mode<synchronous>, transform_indices = @transform_2, window_bounds = array<i64: 32, 128>}, {transform_indices = @transform_3, window_bounds = array<i64: 32, 128>}, {transform_indices = @transform_4, window_bounds = array<i64: 1, 128>}, {transform_indices = @transform_5, window_bounds = array<i64: 1, 128>}]} {
    %c0 = arith.constant 0 : index
    %c0_0 = arith.constant 0 : index
    %c0_1 = arith.constant 0 : index
    %0 = vector.load %arg1[%c0, %c0_0, %c0_1] : memref<2x16x4xf32, #tpu.memory_space<vmem>>, vector<1x16x4xf32>
    %1 = vector.shape_cast %0 : vector<1x16x4xf32> to vector<16x4xf32>
    %cst = arith.constant 0.000000e+00 : f32
    %2 = vector.broadcast %cst : f32 to vector<29x4xf32>
    %c0_2 = arith.constant 0 : index
    %c0_3 = arith.constant 0 : index
    %c0_4 = arith.constant 0 : index
    %3 = vector.load %arg7[%c0_2, %c0_3, %c0_4] : memref<2x75x4xf32, #tpu.memory_space<vmem>>, vector<1x29x4xf32>
    %4 = vector.shape_cast %3 : vector<1x29x4xf32> to vector<29x4xf32>
    %5 = vector.shape_cast %2 : vector<29x4xf32> to vector<1x29x4xf32>
    tpu.vector_store %arg7[%c0_2, %c0_3, %c0_4], %5 {strides = array<i32>} : memref<2x75x4xf32, #tpu.memory_space<vmem>>, vector<1x29x4xf32>,
    %cst_5 = arith.constant 0.000000e+00 : f32
    %6 = vector.broadcast %cst_5 : f32 to vector<30x4xf32>
    %c0_6 = arith.constant 0 : index
    %c45 = arith.constant 45 : index
    %c0_7 = arith.constant 0 : index
    %7 = vector.load %arg7[%c0_6, %c45, %c0_7] : memref<2x75x4xf32, #tpu.memory_space<vmem>>, vector<1x30x4xf32>
    %8 = vector.shape_cast %7 : vector<1x30x4xf32> to vector<30x4xf32>
    %9 = vector.shape_cast %6 : vector<30x4xf32> to vector<1x30x4xf32>
    tpu.vector_store %arg7[%c0_6, %c45, %c0_7], %9 {strides = array<i32>} : memref<2x75x4xf32, #tpu.memory_space<vmem>>, vector<1x30x4xf32>,
    %c0_8 = arith.constant 0 : index
    %c29 = arith.constant 29 : index
    %c0_9 = arith.constant 0 : index
    %10 = vector.load %arg7[%c0_8, %c29, %c0_9] : memref<2x75x4xf32, #tpu.memory_space<vmem>>, vector<1x16x4xf32>
    %11 = vector.shape_cast %10 : vector<1x16x4xf32> to vector<16x4xf32>
    %12 = vector.shape_cast %1 : vector<16x4xf32> to vector<1x16x4xf32>
    tpu.vector_store %arg7[%c0_8, %c29, %c0_9], %12 {strides = array<i32>} : memref<2x75x4xf32, #tpu.memory_space<vmem>>, vector<1x16x4xf32>,
    %cst_10 = arith.constant 0xFF800000 : f32
    %13 = vector.broadcast %cst_10 : f32 to vector<2x4xf32>
    %c0_11 = arith.constant 0 : index
    %c0_12 = arith.constant 0 : index
    %c0_13 = arith.constant 0 : index
    %14 = vector.load %arg8[%c0_11, %c0_12, %c0_13] : memref<2x20x4xf32, #tpu.memory_space<vmem>>, vector<1x2x4xf32>
    %15 = vector.shape_cast %14 : vector<1x2x4xf32> to vector<2x4xf32>
    %16 = vector.shape_cast %13 : vector<2x4xf32> to vector<1x2x4xf32>
    tpu.vector_store %arg8[%c0_11, %c0_12, %c0_13], %16 {strides = array<i32>} : memref<2x20x4xf32, #tpu.memory_space<vmem>>, vector<1x2x4xf32>,
    %cst_14 = arith.constant 0xFF800000 : f32
    %17 = vector.broadcast %cst_14 : f32 to vector<2x4xf32>
    %c0_15 = arith.constant 0 : index
    %c18 = arith.constant 18 : index
    %c0_16 = arith.constant 0 : index
    %18 = vector.load %arg8[%c0_15, %c18, %c0_16] : memref<2x20x4xf32, #tpu.memory_space<vmem>>, vector<1x2x4xf32>
    %19 = vector.shape_cast %18 : vector<1x2x4xf32> to vector<2x4xf32>
    %20 = vector.shape_cast %17 : vector<2x4xf32> to vector<1x2x4xf32>
    tpu.vector_store %arg8[%c0_15, %c18, %c0_16], %20 {strides = array<i32>} : memref<2x20x4xf32, #tpu.memory_space<vmem>>, vector<1x2x4xf32>,
    %c0_17 = arith.constant 0 : index
    %c2 = arith.constant 2 : index
    %c0_18 = arith.constant 0 : index
    %21 = vector.load %arg8[%c0_17, %c2, %c0_18] : memref<2x20x4xf32, #tpu.memory_space<vmem>>, vector<1x16x4xf32>
    %22 = vector.shape_cast %21 : vector<1x16x4xf32> to vector<16x4xf32>
    %23 = vector.shape_cast %1 : vector<16x4xf32> to vector<1x16x4xf32>
    tpu.vector_store %arg8[%c0_17, %c2, %c0_18], %23 {strides = array<i32>} : memref<2x20x4xf32, #tpu.memory_space<vmem>>, vector<1x16x4xf32>,
    %c1 = arith.constant 1 : index
    %c0_19 = arith.constant 0 : index
    %c0_20 = arith.constant 0 : index
    %24 = vector.load %arg1[%c1, %c0_19, %c0_20] : memref<2x16x4xf32, #tpu.memory_space<vmem>>, vector<1x16x4xf32>
    %25 = vector.shape_cast %24 : vector<1x16x4xf32> to vector<16x4xf32>
    %cst_21 = arith.constant 0.000000e+00 : f32
    %26 = vector.broadcast %cst_21 : f32 to vector<29x4xf32>
    %c1_22 = arith.constant 1 : index
    %c0_23 = arith.constant 0 : index
    %c0_24 = arith.constant 0 : index
    %27 = vector.load %arg7[%c1_22, %c0_23, %c0_24] : memref<2x75x4xf32, #tpu.memory_space<vmem>>, vector<1x29x4xf32>
    %28 = vector.shape_cast %27 : vector<1x29x4xf32> to vector<29x4xf32>
    %29 = vector.shape_cast %26 : vector<29x4xf32> to vector<1x29x4xf32>
    tpu.vector_store %arg7[%c1_22, %c0_23, %c0_24], %29 {strides = array<i32>} : memref<2x75x4xf32, #tpu.memory_space<vmem>>, vector<1x29x4xf32>,
    %cst_25 = arith.constant 0.000000e+00 : f32
    %30 = vector.broadcast %cst_25 : f32 to vector<30x4xf32>
    %c1_26 = arith.constant 1 : index
    %c45_27 = arith.constant 45 : index
    %c0_28 = arith.constant 0 : index
    %31 = vector.load %arg7[%c1_26, %c45_27, %c0_28] : memref<2x75x4xf32, #tpu.memory_space<vmem>>, vector<1x30x4xf32>
    %32 = vector.shape_cast %31 : vector<1x30x4xf32> to vector<30x4xf32>
    %33 = vector.shape_cast %30 : vector<30x4xf32> to vector<1x30x4xf32>
    tpu.vector_store %arg7[%c1_26, %c45_27, %c0_28], %33 {strides = array<i32>} : memref<2x75x4xf32, #tpu.memory_space<vmem>>, vector<1x30x4xf32>,
    %c1_29 = arith.constant 1 : index
    %c29_30 = arith.constant 29 : index
    %c0_31 = arith.constant 0 : index
    %34 = vector.load %arg7[%c1_29, %c29_30, %c0_31] : memref<2x75x4xf32, #tpu.memory_space<vmem>>, vector<1x16x4xf32>
    %35 = vector.shape_cast %34 : vector<1x16x4xf32> to vector<16x4xf32>
    %36 = vector.shape_cast %25 : vector<16x4xf32> to vector<1x16x4xf32>
    tpu.vector_store %arg7[%c1_29, %c29_30, %c0_31], %36 {strides = array<i32>} : memref<2x75x4xf32, #tpu.memory_space<vmem>>, vector<1x16x4xf32>,
    %cst_32 = arith.constant 0xFF800000 : f32
    %37 = vector.broadcast %cst_32 : f32 to vector<2x4xf32>
    %c1_33 = arith.constant 1 : index
    %c0_34 = arith.constant 0 : index
    %c0_35 = arith.constant 0 : index
    %38 = vector.load %arg8[%c1_33, %c0_34, %c0_35] : memref<2x20x4xf32, #tpu.memory_space<vmem>>, vector<1x2x4xf32>
    %39 = vector.shape_cast %38 : vector<1x2x4xf32> to vector<2x4xf32>
    %40 = vector.shape_cast %37 : vector<2x4xf32> to vector<1x2x4xf32>
    tpu.vector_store %arg8[%c1_33, %c0_34, %c0_35], %40 {strides = array<i32>} : memref<2x20x4xf32, #tpu.memory_space<vmem>>, vector<1x2x4xf32>,
    %cst_36 = arith.constant 0xFF800000 : f32
    %41 = vector.broadcast %cst_36 : f32 to vector<2x4xf32>
    %c1_37 = arith.constant 1 : index
    %c18_38 = arith.constant 18 : index
    %c0_39 = arith.constant 0 : index
    %42 = vector.load %arg8[%c1_37, %c18_38, %c0_39] : memref<2x20x4xf32, #tpu.memory_space<vmem>>, vector<1x2x4xf32>
    %43 = vector.shape_cast %42 : vector<1x2x4xf32> to vector<2x4xf32>
    %44 = vector.shape_cast %41 : vector<2x4xf32> to vector<1x2x4xf32>
    tpu.vector_store %arg8[%c1_37, %c18_38, %c0_39], %44 {strides = array<i32>} : memref<2x20x4xf32, #tpu.memory_space<vmem>>, vector<1x2x4xf32>,
    %c1_40 = arith.constant 1 : index
    %c2_41 = arith.constant 2 : index
    %c0_42 = arith.constant 0 : index
    %45 = vector.load %arg8[%c1_40, %c2_41, %c0_42] : memref<2x20x4xf32, #tpu.memory_space<vmem>>, vector<1x16x4xf32>
    %46 = vector.shape_cast %45 : vector<1x16x4xf32> to vector<16x4xf32>
    %47 = vector.shape_cast %25 : vector<16x4xf32> to vector<1x16x4xf32>
    tpu.vector_store %arg8[%c1_40, %c2_41, %c0_42], %47 {strides = array<i32>} : memref<2x20x4xf32, #tpu.memory_space<vmem>>, vector<1x16x4xf32>,
    %c0_43 = arith.constant 0 : index
    %c0_44 = arith.constant 0 : index
    %c0_45 = arith.constant 0 : index
    %48 = vector.load %arg7[%c0_43, %c0_44, %c0_45] : memref<2x75x4xf32, #tpu.memory_space<vmem>>, vector<1x16x4xf32>
    %49 = vector.shape_cast %48 : vector<1x16x4xf32> to vector<16x4xf32>
    %c0_46 = arith.constant 0 : index
    %c1_47 = arith.constant 1 : index
    %c0_48 = arith.constant 0 : index
    %50 = vector.load %arg7[%c0_46, %c1_47, %c0_48] : memref<2x75x4xf32, #tpu.memory_space<vmem>>, vector<1x16x4xf32>
    %51 = vector.shape_cast %50 : vector<1x16x4xf32> to vector<16x4xf32>
    %c0_49 = arith.constant 0 : index
    %c2_50 = arith.constant 2 : index
    %c0_51 = arith.constant 0 : index
    %52 = vector.load %arg7[%c0_49, %c2_50, %c0_51] : memref<2x75x4xf32, #tpu.memory_space<vmem>>, vector<1x16x4xf32>
    %53 = vector.shape_cast %52 : vector<1x16x4xf32> to vector<16x4xf32>
    %c0_52 = arith.constant 0 : index
    %c3 = arith.constant 3 : index
    %c0_53 = arith.constant 0 : index
    %54 = vector.load %arg7[%c0_52, %c3, %c0_53] : memref<2x75x4xf32, #tpu.memory_space<vmem>>, vector<1x16x4xf32>
    %55 = vector.shape_cast %54 : vector<1x16x4xf32> to vector<16x4xf32>
    %c0_54 = arith.constant 0 : index
    %c4 = arith.constant 4 : index
    %c0_55 = arith.constant 0 : index
    %56 = vector.load %arg7[%c0_54, %c4, %c0_55] : memref<2x75x4xf32, #tpu.memory_space<vmem>>, vector<1x16x4xf32>
    %57 = vector.shape_cast %56 : vector<1x16x4xf32> to vector<16x4xf32>
    %c0_56 = arith.constant 0 : index
    %c5 = arith.constant 5 : index
    %c0_57 = arith.constant 0 : index
    %58 = vector.load %arg7[%c0_56, %c5, %c0_57] : memref<2x75x4xf32, #tpu.memory_space<vmem>>, vector<1x16x4xf32>
    %59 = vector.shape_cast %58 : vector<1x16x4xf32> to vector<16x4xf32>
    %c0_58 = arith.constant 0 : index
    %c6 = arith.constant 6 : index
    %c0_59 = arith.constant 0 : index
    %60 = vector.load %arg7[%c0_58, %c6, %c0_59] : memref<2x75x4xf32, #tpu.memory_space<vmem>>, vector<1x16x4xf32>
    %61 = vector.shape_cast %60 : vector<1x16x4xf32> to vector<16x4xf32>
    %c0_60 = arith.constant 0 : index
    %c7 = arith.constant 7 : index
    %c0_61 = arith.constant 0 : index
    %62 = vector.load %arg7[%c0_60, %c7, %c0_61] : memref<2x75x4xf32, #tpu.memory_space<vmem>>, vector<1x16x4xf32>
    %63 = vector.shape_cast %62 : vector<1x16x4xf32> to vector<16x4xf32>
    %c0_62 = arith.constant 0 : index
    %c8 = arith.constant 8 : index
    %c0_63 = arith.constant 0 : index
    %64 = vector.load %arg7[%c0_62, %c8, %c0_63] : memref<2x75x4xf32, #tpu.memory_space<vmem>>, vector<1x16x4xf32>
    %65 = vector.shape_cast %64 : vector<1x16x4xf32> to vector<16x4xf32>
    %c0_64 = arith.constant 0 : index
    %c9 = arith.constant 9 : index
    %c0_65 = arith.constant 0 : index
    %66 = vector.load %arg7[%c0_64, %c9, %c0_65] : memref<2x75x4xf32, #tpu.memory_space<vmem>>, vector<1x16x4xf32>
    %67 = vector.shape_cast %66 : vector<1x16x4xf32> to vector<16x4xf32>
    %c0_66 = arith.constant 0 : index
    %c10 = arith.constant 10 : index
    %c0_67 = arith.constant 0 : index
    %68 = vector.load %arg7[%c0_66, %c10, %c0_67] : memref<2x75x4xf32, #tpu.memory_space<vmem>>, vector<1x16x4xf32>
    %69 = vector.shape_cast %68 : vector<1x16x4xf32> to vector<16x4xf32>
    %c0_68 = arith.constant 0 : index
    %c11 = arith.constant 11 : index
    %c0_69 = arith.constant 0 : index
    %70 = vector.load %arg7[%c0_68, %c11, %c0_69] : memref<2x75x4xf32, #tpu.memory_space<vmem>>, vector<1x16x4xf32>
    %71 = vector.shape_cast %70 : vector<1x16x4xf32> to vector<16x4xf32>
    %c0_70 = arith.constant 0 : index
    %c12 = arith.constant 12 : index
    %c0_71 = arith.constant 0 : index
    %72 = vector.load %arg7[%c0_70, %c12, %c0_71] : memref<2x75x4xf32, #tpu.memory_space<vmem>>, vector<1x16x4xf32>
    %73 = vector.shape_cast %72 : vector<1x16x4xf32> to vector<16x4xf32>
    %c0_72 = arith.constant 0 : index
    %c13 = arith.constant 13 : index
    %c0_73 = arith.constant 0 : index
    %74 = vector.load %arg7[%c0_72, %c13, %c0_73] : memref<2x75x4xf32, #tpu.memory_space<vmem>>, vector<1x16x4xf32>
    %75 = vector.shape_cast %74 : vector<1x16x4xf32> to vector<16x4xf32>
    %c0_74 = arith.constant 0 : index
    %c14 = arith.constant 14 : index
    %c0_75 = arith.constant 0 : index
    %76 = vector.load %arg7[%c0_74, %c14, %c0_75] : memref<2x75x4xf32, #tpu.memory_space<vmem>>, vector<1x16x4xf32>
    %77 = vector.shape_cast %76 : vector<1x16x4xf32> to vector<16x4xf32>
    %c0_76 = arith.constant 0 : index
    %c15 = arith.constant 15 : index
    %c0_77 = arith.constant 0 : index
    %78 = vector.load %arg7[%c0_76, %c15, %c0_77] : memref<2x75x4xf32, #tpu.memory_space<vmem>>, vector<1x16x4xf32>
    %79 = vector.shape_cast %78 : vector<1x16x4xf32> to vector<16x4xf32>
    %c0_78 = arith.constant 0 : index
    %c16 = arith.constant 16 : index
    %c0_79 = arith.constant 0 : index
    %80 = vector.load %arg7[%c0_78, %c16, %c0_79] : memref<2x75x4xf32, #tpu.memory_space<vmem>>, vector<1x16x4xf32>
    %81 = vector.shape_cast %80 : vector<1x16x4xf32> to vector<16x4xf32>
    %c0_80 = arith.constant 0 : index
    %c17 = arith.constant 17 : index
    %c0_81 = arith.constant 0 : index
    %82 = vector.load %arg7[%c0_80, %c17, %c0_81] : memref<2x75x4xf32, #tpu.memory_space<vmem>>, vector<1x16x4xf32>
    %83 = vector.shape_cast %82 : vector<1x16x4xf32> to vector<16x4xf32>
    %c0_82 = arith.constant 0 : index
    %c18_83 = arith.constant 18 : index
    %c0_84 = arith.constant 0 : index
    %84 = vector.load %arg7[%c0_82, %c18_83, %c0_84] : memref<2x75x4xf32, #tpu.memory_space<vmem>>, vector<1x16x4xf32>
    %85 = vector.shape_cast %84 : vector<1x16x4xf32> to vector<16x4xf32>
    %c0_85 = arith.constant 0 : index
    %c19 = arith.constant 19 : index
    %c0_86 = arith.constant 0 : index
    %86 = vector.load %arg7[%c0_85, %c19, %c0_86] : memref<2x75x4xf32, #tpu.memory_space<vmem>>, vector<1x16x4xf32>
    %87 = vector.shape_cast %86 : vector<1x16x4xf32> to vector<16x4xf32>
    %c0_87 = arith.constant 0 : index
    %c20 = arith.constant 20 : index
    %c0_88 = arith.constant 0 : index
    %88 = vector.load %arg7[%c0_87, %c20, %c0_88] : memref<2x75x4xf32, #tpu.memory_space<vmem>>, vector<1x16x4xf32>
    %89 = vector.shape_cast %88 : vector<1x16x4xf32> to vector<16x4xf32>
    %c0_89 = arith.constant 0 : index
    %c21 = arith.constant 21 : index
    %c0_90 = arith.constant 0 : index
    %90 = vector.load %arg7[%c0_89, %c21, %c0_90] : memref<2x75x4xf32, #tpu.memory_space<vmem>>, vector<1x16x4xf32>
    %91 = vector.shape_cast %90 : vector<1x16x4xf32> to vector<16x4xf32>
    %c0_91 = arith.constant 0 : index
    %c22 = arith.constant 22 : index
    %c0_92 = arith.constant 0 : index
    %92 = vector.load %arg7[%c0_91, %c22, %c0_92] : memref<2x75x4xf32, #tpu.memory_space<vmem>>, vector<1x16x4xf32>
    %93 = vector.shape_cast %92 : vector<1x16x4xf32> to vector<16x4xf32>
    %c0_93 = arith.constant 0 : index
    %c23 = arith.constant 23 : index
    %c0_94 = arith.constant 0 : index
    %94 = vector.load %arg7[%c0_93, %c23, %c0_94] : memref<2x75x4xf32, #tpu.memory_space<vmem>>, vector<1x16x4xf32>
    %95 = vector.shape_cast %94 : vector<1x16x4xf32> to vector<16x4xf32>
    %c0_95 = arith.constant 0 : index
    %c24 = arith.constant 24 : index
    %c0_96 = arith.constant 0 : index
    %96 = vector.load %arg7[%c0_95, %c24, %c0_96] : memref<2x75x4xf32, #tpu.memory_space<vmem>>, vector<1x16x4xf32>
    %97 = vector.shape_cast %96 : vector<1x16x4xf32> to vector<16x4xf32>
    %c0_97 = arith.constant 0 : index
    %c25 = arith.constant 25 : index
    %c0_98 = arith.constant 0 : index
    %98 = vector.load %arg7[%c0_97, %c25, %c0_98] : memref<2x75x4xf32, #tpu.memory_space<vmem>>, vector<1x16x4xf32>
    %99 = vector.shape_cast %98 : vector<1x16x4xf32> to vector<16x4xf32>
    %c0_99 = arith.constant 0 : index
    %c26 = arith.constant 26 : index
    %c0_100 = arith.constant 0 : index
    %100 = vector.load %arg7[%c0_99, %c26, %c0_100] : memref<2x75x4xf32, #tpu.memory_space<vmem>>, vector<1x16x4xf32>
    %101 = vector.shape_cast %100 : vector<1x16x4xf32> to vector<16x4xf32>
    %c0_101 = arith.constant 0 : index
    %c27 = arith.constant 27 : index
    %c0_102 = arith.constant 0 : index
    %102 = vector.load %arg7[%c0_101, %c27, %c0_102] : memref<2x75x4xf32, #tpu.memory_space<vmem>>, vector<1x16x4xf32>
    %103 = vector.shape_cast %102 : vector<1x16x4xf32> to vector<16x4xf32>
    %c0_103 = arith.constant 0 : index
    %c28 = arith.constant 28 : index
    %c0_104 = arith.constant 0 : index
    %104 = vector.load %arg7[%c0_103, %c28, %c0_104] : memref<2x75x4xf32, #tpu.memory_space<vmem>>, vector<1x16x4xf32>
    %105 = vector.shape_cast %104 : vector<1x16x4xf32> to vector<16x4xf32>
    %c0_105 = arith.constant 0 : index
    %c29_106 = arith.constant 29 : index
    %c0_107 = arith.constant 0 : index
    %106 = vector.load %arg7[%c0_105, %c29_106, %c0_107] : memref<2x75x4xf32, #tpu.memory_space<vmem>>, vector<1x16x4xf32>
    %107 = vector.shape_cast %106 : vector<1x16x4xf32> to vector<16x4xf32>
    %c0_108 = arith.constant 0 : index
    %c30 = arith.constant 30 : index
    %c0_109 = arith.constant 0 : index
    %108 = vector.load %arg7[%c0_108, %c30, %c0_109] : memref<2x75x4xf32, #tpu.memory_space<vmem>>, vector<1x16x4xf32>
    %109 = vector.shape_cast %108 : vector<1x16x4xf32> to vector<16x4xf32>
    %c0_110 = arith.constant 0 : index
    %c31 = arith.constant 31 : index
    %c0_111 = arith.constant 0 : index
    %110 = vector.load %arg7[%c0_110, %c31, %c0_111] : memref<2x75x4xf32, #tpu.memory_space<vmem>>, vector<1x16x4xf32>
    %111 = vector.shape_cast %110 : vector<1x16x4xf32> to vector<16x4xf32>
    %112 = tpu.concatenate %49, %51, %53, %55, %57, %59, %61, %63, %65, %67, %69, %71, %73, %75, %77, %79 in 1 : vector<16x4xf32>, vector<16x4xf32>, vector<16x4xf32>, vector<16x4xf32>, vector<16x4xf32>, vector<16x4xf32>, vector<16x4xf32>, vector<16x4xf32>, vector<16x4xf32>, vector<16x4xf32>, vector<16x4xf32>, vector<16x4xf32>, vector<16x4xf32>, vector<16x4xf32>, vector<16x4xf32>, vector<16x4xf32> -> vector<16x64xf32>
    %113 = tpu.concatenate %81, %83, %85, %87, %89, %91, %93, %95, %97, %99, %101, %103, %105, %107, %109, %111 in 1 : vector<16x4xf32>, vector<16x4xf32>, vector<16x4xf32>, vector<16x4xf32>, vector<16x4xf32>, vector<16x4xf32>, vector<16x4xf32>, vector<16x4xf32>, vector<16x4xf32>, vector<16x4xf32>, vector<16x4xf32>, vector<16x4xf32>, vector<16x4xf32>, vector<16x4xf32>, vector<16x4xf32>, vector<16x4xf32> -> vector<16x64xf32>
    %114 = tpu.concatenate %112, %113 in 1 : vector<16x64xf32>, vector<16x64xf32> -> vector<16x128xf32>
    %115 = arith.truncf %114 : vector<16x128xf32> to vector<16x128xbf16>
    %c0_112 = arith.constant 0 : index
    %c0_113 = arith.constant 0 : index
    %116 = vector.load %arg9[%c0_112, %c0_113] : memref<32x256xbf16, #tpu.memory_space<vmem>>, vector<16x128xbf16>
    tpu.vector_store %arg9[%c0_112, %c0_113], %115 {strides = array<i32>} : memref<32x256xbf16, #tpu.memory_space<vmem>>, vector<16x128xbf16>,
    %c0_114 = arith.constant 0 : index
    %c0_115 = arith.constant 0 : index
    %c0_116 = arith.constant 0 : index
    %117 = vector.load %arg8[%c0_114, %c0_115, %c0_116] : memref<2x20x4xf32, #tpu.memory_space<vmem>>, vector<1x16x4xf32>
    %118 = vector.shape_cast %117 : vector<1x16x4xf32> to vector<16x4xf32>
    %c0_117 = arith.constant 0 : index
    %c1_118 = arith.constant 1 : index
    %c0_119 = arith.constant 0 : index
    %119 = vector.load %arg8[%c0_117, %c1_118, %c0_119] : memref<2x20x4xf32, #tpu.memory_space<vmem>>, vector<1x16x4xf32>
    %120 = vector.shape_cast %119 : vector<1x16x4xf32> to vector<16x4xf32>
    %121 = arith.maximumf %118, %120 : vector<16x4xf32>
    %c0_120 = arith.constant 0 : index
    %c2_121 = arith.constant 2 : index
    %c0_122 = arith.constant 0 : index
    %122 = vector.load %arg8[%c0_120, %c2_121, %c0_122] : memref<2x20x4xf32, #tpu.memory_space<vmem>>, vector<1x16x4xf32>
    %123 = vector.shape_cast %122 : vector<1x16x4xf32> to vector<16x4xf32>
    %124 = arith.maximumf %121, %123 : vector<16x4xf32>
    %c0_123 = arith.constant 0 : index
    %c3_124 = arith.constant 3 : index
    %c0_125 = arith.constant 0 : index
    %125 = vector.load %arg8[%c0_123, %c3_124, %c0_125] : memref<2x20x4xf32, #tpu.memory_space<vmem>>, vector<1x16x4xf32>
    %126 = vector.shape_cast %125 : vector<1x16x4xf32> to vector<16x4xf32>
    %127 = arith.maximumf %124, %126 : vector<16x4xf32>
    %c0_126 = arith.constant 0 : index
    %c4_127 = arith.constant 4 : index
    %c0_128 = arith.constant 0 : index
    %128 = vector.load %arg8[%c0_126, %c4_127, %c0_128] : memref<2x20x4xf32, #tpu.memory_space<vmem>>, vector<1x16x4xf32>
    %129 = vector.shape_cast %128 : vector<1x16x4xf32> to vector<16x4xf32>
    %130 = arith.maximumf %127, %129 : vector<16x4xf32>
    %c0_129 = arith.constant 0 : index
    %c32 = arith.constant 32 : index
    %c0_130 = arith.constant 0 : index
    %131 = vector.load %arg7[%c0_129, %c32, %c0_130] : memref<2x75x4xf32, #tpu.memory_space<vmem>>, vector<1x16x4xf32>
    %132 = vector.shape_cast %131 : vector<1x16x4xf32> to vector<16x4xf32>
    %c0_131 = arith.constant 0 : index
    %c33 = arith.constant 33 : index
    %c0_132 = arith.constant 0 : index
    %133 = vector.load %arg7[%c0_131, %c33, %c0_132] : memref<2x75x4xf32, #tpu.memory_space<vmem>>, vector<1x16x4xf32>
    %134 = vector.shape_cast %133 : vector<1x16x4xf32> to vector<16x4xf32>
    %c0_133 = arith.constant 0 : index
    %c34 = arith.constant 34 : index
    %c0_134 = arith.constant 0 : index
    %135 = vector.load %arg7[%c0_133, %c34, %c0_134] : memref<2x75x4xf32, #tpu.memory_space<vmem>>, vector<1x16x4xf32>
    %136 = vector.shape_cast %135 : vector<1x16x4xf32> to vector<16x4xf32>
    %c0_135 = arith.constant 0 : index
    %c35 = arith.constant 35 : index
    %c0_136 = arith.constant 0 : index
    %137 = vector.load %arg7[%c0_135, %c35, %c0_136] : memref<2x75x4xf32, #tpu.memory_space<vmem>>, vector<1x16x4xf32>
    %138 = vector.shape_cast %137 : vector<1x16x4xf32> to vector<16x4xf32>
    %c0_137 = arith.constant 0 : index
    %c36 = arith.constant 36 : index
    %c0_138 = arith.constant 0 : index
    %139 = vector.load %arg7[%c0_137, %c36, %c0_138] : memref<2x75x4xf32, #tpu.memory_space<vmem>>, vector<1x16x4xf32>
    %140 = vector.shape_cast %139 : vector<1x16x4xf32> to vector<16x4xf32>
    %c0_139 = arith.constant 0 : index
    %c37 = arith.constant 37 : index
    %c0_140 = arith.constant 0 : index
    %141 = vector.load %arg7[%c0_139, %c37, %c0_140] : memref<2x75x4xf32, #tpu.memory_space<vmem>>, vector<1x16x4xf32>
    %142 = vector.shape_cast %141 : vector<1x16x4xf32> to vector<16x4xf32>
    %c0_141 = arith.constant 0 : index
    %c38 = arith.constant 38 : index
    %c0_142 = arith.constant 0 : index
    %143 = vector.load %arg7[%c0_141, %c38, %c0_142] : memref<2x75x4xf32, #tpu.memory_space<vmem>>, vector<1x16x4xf32>
    %144 = vector.shape_cast %143 : vector<1x16x4xf32> to vector<16x4xf32>
    %c0_143 = arith.constant 0 : index
    %c39 = arith.constant 39 : index
    %c0_144 = arith.constant 0 : index
    %145 = vector.load %arg7[%c0_143, %c39, %c0_144] : memref<2x75x4xf32, #tpu.memory_space<vmem>>, vector<1x16x4xf32>
    %146 = vector.shape_cast %145 : vector<1x16x4xf32> to vector<16x4xf32>
    %c0_145 = arith.constant 0 : index
    %c40 = arith.constant 40 : index
    %c0_146 = arith.constant 0 : index
    %147 = vector.load %arg7[%c0_145, %c40, %c0_146] : memref<2x75x4xf32, #tpu.memory_space<vmem>>, vector<1x16x4xf32>
    %148 = vector.shape_cast %147 : vector<1x16x4xf32> to vector<16x4xf32>
    %c0_147 = arith.constant 0 : index
    %c41 = arith.constant 41 : index
    %c0_148 = arith.constant 0 : index
    %149 = vector.load %arg7[%c0_147, %c41, %c0_148] : memref<2x75x4xf32, #tpu.memory_space<vmem>>, vector<1x16x4xf32>
    %150 = vector.shape_cast %149 : vector<1x16x4xf32> to vector<16x4xf32>
    %c0_149 = arith.constant 0 : index
    %c42 = arith.constant 42 : index
    %c0_150 = arith.constant 0 : index
    %151 = vector.load %arg7[%c0_149, %c42, %c0_150] : memref<2x75x4xf32, #tpu.memory_space<vmem>>, vector<1x16x4xf32>
    %152 = vector.shape_cast %151 : vector<1x16x4xf32> to vector<16x4xf32>
    %c0_151 = arith.constant 0 : index
    %c43 = arith.constant 43 : index
    %c0_152 = arith.constant 0 : index
    %153 = vector.load %arg7[%c0_151, %c43, %c0_152] : memref<2x75x4xf32, #tpu.memory_space<vmem>>, vector<1x16x4xf32>
    %154 = vector.shape_cast %153 : vector<1x16x4xf32> to vector<16x4xf32>
    %c0_153 = arith.constant 0 : index
    %c44 = arith.constant 44 : index
    %c0_154 = arith.constant 0 : index
    %155 = vector.load %arg7[%c0_153, %c44, %c0_154] : memref<2x75x4xf32, #tpu.memory_space<vmem>>, vector<1x16x4xf32>
    %156 = vector.shape_cast %155 : vector<1x16x4xf32> to vector<16x4xf32>
    %c0_155 = arith.constant 0 : index
    %c45_156 = arith.constant 45 : index
    %c0_157 = arith.constant 0 : index
    %157 = vector.load %arg7[%c0_155, %c45_156, %c0_157] : memref<2x75x4xf32, #tpu.memory_space<vmem>>, vector<1x16x4xf32>
    %158 = vector.shape_cast %157 : vector<1x16x4xf32> to vector<16x4xf32>
    %c0_158 = arith.constant 0 : index
    %c46 = arith.constant 46 : index
    %c0_159 = arith.constant 0 : index
    %159 = vector.load %arg7[%c0_158, %c46, %c0_159] : memref<2x75x4xf32, #tpu.memory_space<vmem>>, vector<1x16x4xf32>
    %160 = vector.shape_cast %159 : vector<1x16x4xf32> to vector<16x4xf32>
    %c0_160 = arith.constant 0 : index
    %c47 = arith.constant 47 : index
    %c0_161 = arith.constant 0 : index
    %161 = vector.load %arg7[%c0_160, %c47, %c0_161] : memref<2x75x4xf32, #tpu.memory_space<vmem>>, vector<1x16x4xf32>
    %162 = vector.shape_cast %161 : vector<1x16x4xf32> to vector<16x4xf32>
    %c0_162 = arith.constant 0 : index
    %c48 = arith.constant 48 : index
    %c0_163 = arith.constant 0 : index
    %163 = vector.load %arg7[%c0_162, %c48, %c0_163] : memref<2x75x4xf32, #tpu.memory_space<vmem>>, vector<1x16x4xf32>
    %164 = vector.shape_cast %163 : vector<1x16x4xf32> to vector<16x4xf32>
    %c0_164 = arith.constant 0 : index
    %c49 = arith.constant 49 : index
    %c0_165 = arith.constant 0 : index
    %165 = vector.load %arg7[%c0_164, %c49, %c0_165] : memref<2x75x4xf32, #tpu.memory_space<vmem>>, vector<1x16x4xf32>
    %166 = vector.shape_cast %165 : vector<1x16x4xf32> to vector<16x4xf32>
    %c0_166 = arith.constant 0 : index
    %c50 = arith.constant 50 : index
    %c0_167 = arith.constant 0 : index
    %167 = vector.load %arg7[%c0_166, %c50, %c0_167] : memref<2x75x4xf32, #tpu.memory_space<vmem>>, vector<1x16x4xf32>
    %168 = vector.shape_cast %167 : vector<1x16x4xf32> to vector<16x4xf32>
    %c0_168 = arith.constant 0 : index
    %c51 = arith.constant 51 : index
    %c0_169 = arith.constant 0 : index
    %169 = vector.load %arg7[%c0_168, %c51, %c0_169] : memref<2x75x4xf32, #tpu.memory_space<vmem>>, vector<1x16x4xf32>
    %170 = vector.shape_cast %169 : vector<1x16x4xf32> to vector<16x4xf32>
    %c0_170 = arith.constant 0 : index
    %c52 = arith.constant 52 : index
    %c0_171 = arith.constant 0 : index
    %171 = vector.load %arg7[%c0_170, %c52, %c0_171] : memref<2x75x4xf32, #tpu.memory_space<vmem>>, vector<1x16x4xf32>
    %172 = vector.shape_cast %171 : vector<1x16x4xf32> to vector<16x4xf32>
    %c0_172 = arith.constant 0 : index
    %c53 = arith.constant 53 : index
    %c0_173 = arith.constant 0 : index
    %173 = vector.load %arg7[%c0_172, %c53, %c0_173] : memref<2x75x4xf32, #tpu.memory_space<vmem>>, vector<1x16x4xf32>
    %174 = vector.shape_cast %173 : vector<1x16x4xf32> to vector<16x4xf32>
    %c0_174 = arith.constant 0 : index
    %c54 = arith.constant 54 : index
    %c0_175 = arith.constant 0 : index
    %175 = vector.load %arg7[%c0_174, %c54, %c0_175] : memref<2x75x4xf32, #tpu.memory_space<vmem>>, vector<1x16x4xf32>
    %176 = vector.shape_cast %175 : vector<1x16x4xf32> to vector<16x4xf32>
    %c0_176 = arith.constant 0 : index
    %c55 = arith.constant 55 : index
    %c0_177 = arith.constant 0 : index
    %177 = vector.load %arg7[%c0_176, %c55, %c0_177] : memref<2x75x4xf32, #tpu.memory_space<vmem>>, vector<1x16x4xf32>
    %178 = vector.shape_cast %177 : vector<1x16x4xf32> to vector<16x4xf32>
    %c0_178 = arith.constant 0 : index
    %c56 = arith.constant 56 : index
    %c0_179 = arith.constant 0 : index
    %179 = vector.load %arg7[%c0_178, %c56, %c0_179] : memref<2x75x4xf32, #tpu.memory_space<vmem>>, vector<1x16x4xf32>
    %180 = vector.shape_cast %179 : vector<1x16x4xf32> to vector<16x4xf32>
    %c0_180 = arith.constant 0 : index
    %c57 = arith.constant 57 : index
    %c0_181 = arith.constant 0 : index
    %181 = vector.load %arg7[%c0_180, %c57, %c0_181] : memref<2x75x4xf32, #tpu.memory_space<vmem>>, vector<1x16x4xf32>
    %182 = vector.shape_cast %181 : vector<1x16x4xf32> to vector<16x4xf32>
    %c0_182 = arith.constant 0 : index
    %c58 = arith.constant 58 : index
    %c0_183 = arith.constant 0 : index
    %183 = vector.load %arg7[%c0_182, %c58, %c0_183] : memref<2x75x4xf32, #tpu.memory_space<vmem>>, vector<1x16x4xf32>
    %184 = vector.shape_cast %183 : vector<1x16x4xf32> to vector<16x4xf32>
    %c0_184 = arith.constant 0 : index
    %c59 = arith.constant 59 : index
    %c0_185 = arith.constant 0 : index
    %185 = vector.load %arg7[%c0_184, %c59, %c0_185] : memref<2x75x4xf32, #tpu.memory_space<vmem>>, vector<1x16x4xf32>
    %186 = vector.shape_cast %185 : vector<1x16x4xf32> to vector<16x4xf32>
    %cst_186 = arith.constant 0.000000e+00 : f32
    %187 = vector.broadcast %cst_186 : f32 to vector<16x12xf32>
    %188 = tpu.concatenate %132, %134, %136, %138, %140, %142, %144, %146, %148, %150, %152, %154, %156, %158, %160, %162 in 1 : vector<16x4xf32>, vector<16x4xf32>, vector<16x4xf32>, vector<16x4xf32>, vector<16x4xf32>, vector<16x4xf32>, vector<16x4xf32>, vector<16x4xf32>, vector<16x4xf32>, vector<16x4xf32>, vector<16x4xf32>, vector<16x4xf32>, vector<16x4xf32>, vector<16x4xf32>, vector<16x4xf32>, vector<16x4xf32> -> vector<16x64xf32>
    %189 = tpu.concatenate %164, %166, %168, %170, %172, %174, %176, %178, %180, %182, %184, %186, %130, %187 in 1 : vector<16x4xf32>, vector<16x4xf32>, vector<16x4xf32>, vector<16x4xf32>, vector<16x4xf32>, vector<16x4xf32>, vector<16x4xf32>, vector<16x4xf32>, vector<16x4xf32>, vector<16x4xf32>, vector<16x4xf32>, vector<16x4xf32>, vector<16x4xf32>, vector<16x12xf32> -> vector<16x64xf32>
    %190 = tpu.concatenate %188, %189 in 1 : vector<16x64xf32>, vector<16x64xf32> -> vector<16x128xf32>
    %191 = arith.truncf %190 : vector<16x128xf32> to vector<16x128xbf16>
    %c0_187 = arith.constant 0 : index
    %c128 = arith.constant 128 : index
    %192 = vector.load %arg9[%c0_187, %c128] : memref<32x256xbf16, #tpu.memory_space<vmem>>, vector<16x128xbf16>
    tpu.vector_store %arg9[%c0_187, %c128], %191 {strides = array<i32>} : memref<32x256xbf16, #tpu.memory_space<vmem>>, vector<16x128xbf16>,
    %c1_188 = arith.constant 1 : index
    %c0_189 = arith.constant 0 : index
    %c0_190 = arith.constant 0 : index
    %193 = vector.load %arg7[%c1_188, %c0_189, %c0_190] : memref<2x75x4xf32, #tpu.memory_space<vmem>>, vector<1x16x4xf32>
    %194 = vector.shape_cast %193 : vector<1x16x4xf32> to vector<16x4xf32>
    %c1_191 = arith.constant 1 : index
    %c1_192 = arith.constant 1 : index
    %c0_193 = arith.constant 0 : index
    %195 = vector.load %arg7[%c1_191, %c1_192, %c0_193] : memref<2x75x4xf32, #tpu.memory_space<vmem>>, vector<1x16x4xf32>
    %196 = vector.shape_cast %195 : vector<1x16x4xf32> to vector<16x4xf32>
    %c1_194 = arith.constant 1 : index
    %c2_195 = arith.constant 2 : index
    %c0_196 = arith.constant 0 : index
    %197 = vector.load %arg7[%c1_194, %c2_195, %c0_196] : memref<2x75x4xf32, #tpu.memory_space<vmem>>, vector<1x16x4xf32>
    %198 = vector.shape_cast %197 : vector<1x16x4xf32> to vector<16x4xf32>
    %c1_197 = arith.constant 1 : index
    %c3_198 = arith.constant 3 : index
    %c0_199 = arith.constant 0 : index
    %199 = vector.load %arg7[%c1_197, %c3_198, %c0_199] : memref<2x75x4xf32, #tpu.memory_space<vmem>>, vector<1x16x4xf32>
    %200 = vector.shape_cast %199 : vector<1x16x4xf32> to vector<16x4xf32>
    %c1_200 = arith.constant 1 : index
    %c4_201 = arith.constant 4 : index
    %c0_202 = arith.constant 0 : index
    %201 = vector.load %arg7[%c1_200, %c4_201, %c0_202] : memref<2x75x4xf32, #tpu.memory_space<vmem>>, vector<1x16x4xf32>
    %202 = vector.shape_cast %201 : vector<1x16x4xf32> to vector<16x4xf32>
    %c1_203 = arith.constant 1 : index
    %c5_204 = arith.constant 5 : index
    %c0_205 = arith.constant 0 : index
    %203 = vector.load %arg7[%c1_203, %c5_204, %c0_205] : memref<2x75x4xf32, #tpu.memory_space<vmem>>, vector<1x16x4xf32>
    %204 = vector.shape_cast %203 : vector<1x16x4xf32> to vector<16x4xf32>
    %c1_206 = arith.constant 1 : index
    %c6_207 = arith.constant 6 : index
    %c0_208 = arith.constant 0 : index
    %205 = vector.load %arg7[%c1_206, %c6_207, %c0_208] : memref<2x75x4xf32, #tpu.memory_space<vmem>>, vector<1x16x4xf32>
    %206 = vector.shape_cast %205 : vector<1x16x4xf32> to vector<16x4xf32>
    %c1_209 = arith.constant 1 : index
    %c7_210 = arith.constant 7 : index
    %c0_211 = arith.constant 0 : index
    %207 = vector.load %arg7[%c1_209, %c7_210, %c0_211] : memref<2x75x4xf32, #tpu.memory_space<vmem>>, vector<1x16x4xf32>
    %208 = vector.shape_cast %207 : vector<1x16x4xf32> to vector<16x4xf32>
    %c1_212 = arith.constant 1 : index
    %c8_213 = arith.constant 8 : index
    %c0_214 = arith.constant 0 : index
    %209 = vector.load %arg7[%c1_212, %c8_213, %c0_214] : memref<2x75x4xf32, #tpu.memory_space<vmem>>, vector<1x16x4xf32>
    %210 = vector.shape_cast %209 : vector<1x16x4xf32> to vector<16x4xf32>
    %c1_215 = arith.constant 1 : index
    %c9_216 = arith.constant 9 : index
    %c0_217 = arith.constant 0 : index
    %211 = vector.load %arg7[%c1_215, %c9_216, %c0_217] : memref<2x75x4xf32, #tpu.memory_space<vmem>>, vector<1x16x4xf32>
    %212 = vector.shape_cast %211 : vector<1x16x4xf32> to vector<16x4xf32>
    %c1_218 = arith.constant 1 : index
    %c10_219 = arith.constant 10 : index
    %c0_220 = arith.constant 0 : index
    %213 = vector.load %arg7[%c1_218, %c10_219, %c0_220] : memref<2x75x4xf32, #tpu.memory_space<vmem>>, vector<1x16x4xf32>
    %214 = vector.shape_cast %213 : vector<1x16x4xf32> to vector<16x4xf32>
    %c1_221 = arith.constant 1 : index
    %c11_222 = arith.constant 11 : index
    %c0_223 = arith.constant 0 : index
    %215 = vector.load %arg7[%c1_221, %c11_222, %c0_223] : memref<2x75x4xf32, #tpu.memory_space<vmem>>, vector<1x16x4xf32>
    %216 = vector.shape_cast %215 : vector<1x16x4xf32> to vector<16x4xf32>
    %c1_224 = arith.constant 1 : index
    %c12_225 = arith.constant 12 : index
    %c0_226 = arith.constant 0 : index
    %217 = vector.load %arg7[%c1_224, %c12_225, %c0_226] : memref<2x75x4xf32, #tpu.memory_space<vmem>>, vector<1x16x4xf32>
    %218 = vector.shape_cast %217 : vector<1x16x4xf32> to vector<16x4xf32>
    %c1_227 = arith.constant 1 : index
    %c13_228 = arith.constant 13 : index
    %c0_229 = arith.constant 0 : index
    %219 = vector.load %arg7[%c1_227, %c13_228, %c0_229] : memref<2x75x4xf32, #tpu.memory_space<vmem>>, vector<1x16x4xf32>
    %220 = vector.shape_cast %219 : vector<1x16x4xf32> to vector<16x4xf32>
    %c1_230 = arith.constant 1 : index
    %c14_231 = arith.constant 14 : index
    %c0_232 = arith.constant 0 : index
    %221 = vector.load %arg7[%c1_230, %c14_231, %c0_232] : memref<2x75x4xf32, #tpu.memory_space<vmem>>, vector<1x16x4xf32>
    %222 = vector.shape_cast %221 : vector<1x16x4xf32> to vector<16x4xf32>
    %c1_233 = arith.constant 1 : index
    %c15_234 = arith.constant 15 : index
    %c0_235 = arith.constant 0 : index
    %223 = vector.load %arg7[%c1_233, %c15_234, %c0_235] : memref<2x75x4xf32, #tpu.memory_space<vmem>>, vector<1x16x4xf32>
    %224 = vector.shape_cast %223 : vector<1x16x4xf32> to vector<16x4xf32>
    %c1_236 = arith.constant 1 : index
    %c16_237 = arith.constant 16 : index
    %c0_238 = arith.constant 0 : index
    %225 = vector.load %arg7[%c1_236, %c16_237, %c0_238] : memref<2x75x4xf32, #tpu.memory_space<vmem>>, vector<1x16x4xf32>
    %226 = vector.shape_cast %225 : vector<1x16x4xf32> to vector<16x4xf32>
    %c1_239 = arith.constant 1 : index
    %c17_240 = arith.constant 17 : index
    %c0_241 = arith.constant 0 : index
    %227 = vector.load %arg7[%c1_239, %c17_240, %c0_241] : memref<2x75x4xf32, #tpu.memory_space<vmem>>, vector<1x16x4xf32>
    %228 = vector.shape_cast %227 : vector<1x16x4xf32> to vector<16x4xf32>
    %c1_242 = arith.constant 1 : index
    %c18_243 = arith.constant 18 : index
    %c0_244 = arith.constant 0 : index
    %229 = vector.load %arg7[%c1_242, %c18_243, %c0_244] : memref<2x75x4xf32, #tpu.memory_space<vmem>>, vector<1x16x4xf32>
    %230 = vector.shape_cast %229 : vector<1x16x4xf32> to vector<16x4xf32>
    %c1_245 = arith.constant 1 : index
    %c19_246 = arith.constant 19 : index
    %c0_247 = arith.constant 0 : index
    %231 = vector.load %arg7[%c1_245, %c19_246, %c0_247] : memref<2x75x4xf32, #tpu.memory_space<vmem>>, vector<1x16x4xf32>
    %232 = vector.shape_cast %231 : vector<1x16x4xf32> to vector<16x4xf32>
    %c1_248 = arith.constant 1 : index
    %c20_249 = arith.constant 20 : index
    %c0_250 = arith.constant 0 : index
    %233 = vector.load %arg7[%c1_248, %c20_249, %c0_250] : memref<2x75x4xf32, #tpu.memory_space<vmem>>, vector<1x16x4xf32>
    %234 = vector.shape_cast %233 : vector<1x16x4xf32> to vector<16x4xf32>
    %c1_251 = arith.constant 1 : index
    %c21_252 = arith.constant 21 : index
    %c0_253 = arith.constant 0 : index
    %235 = vector.load %arg7[%c1_251, %c21_252, %c0_253] : memref<2x75x4xf32, #tpu.memory_space<vmem>>, vector<1x16x4xf32>
    %236 = vector.shape_cast %235 : vector<1x16x4xf32> to vector<16x4xf32>
    %c1_254 = arith.constant 1 : index
    %c22_255 = arith.constant 22 : index
    %c0_256 = arith.constant 0 : index
    %237 = vector.load %arg7[%c1_254, %c22_255, %c0_256] : memref<2x75x4xf32, #tpu.memory_space<vmem>>, vector<1x16x4xf32>
    %238 = vector.shape_cast %237 : vector<1x16x4xf32> to vector<16x4xf32>
    %c1_257 = arith.constant 1 : index
    %c23_258 = arith.constant 23 : index
    %c0_259 = arith.constant 0 : index
    %239 = vector.load %arg7[%c1_257, %c23_258, %c0_259] : memref<2x75x4xf32, #tpu.memory_space<vmem>>, vector<1x16x4xf32>
    %240 = vector.shape_cast %239 : vector<1x16x4xf32> to vector<16x4xf32>
    %c1_260 = arith.constant 1 : index
    %c24_261 = arith.constant 24 : index
    %c0_262 = arith.constant 0 : index
    %241 = vector.load %arg7[%c1_260, %c24_261, %c0_262] : memref<2x75x4xf32, #tpu.memory_space<vmem>>, vector<1x16x4xf32>
    %242 = vector.shape_cast %241 : vector<1x16x4xf32> to vector<16x4xf32>
    %c1_263 = arith.constant 1 : index
    %c25_264 = arith.constant 25 : index
    %c0_265 = arith.constant 0 : index
    %243 = vector.load %arg7[%c1_263, %c25_264, %c0_265] : memref<2x75x4xf32, #tpu.memory_space<vmem>>, vector<1x16x4xf32>
    %244 = vector.shape_cast %243 : vector<1x16x4xf32> to vector<16x4xf32>
    %c1_266 = arith.constant 1 : index
    %c26_267 = arith.constant 26 : index
    %c0_268 = arith.constant 0 : index
    %245 = vector.load %arg7[%c1_266, %c26_267, %c0_268] : memref<2x75x4xf32, #tpu.memory_space<vmem>>, vector<1x16x4xf32>
    %246 = vector.shape_cast %245 : vector<1x16x4xf32> to vector<16x4xf32>
    %c1_269 = arith.constant 1 : index
    %c27_270 = arith.constant 27 : index
    %c0_271 = arith.constant 0 : index
    %247 = vector.load %arg7[%c1_269, %c27_270, %c0_271] : memref<2x75x4xf32, #tpu.memory_space<vmem>>, vector<1x16x4xf32>
    %248 = vector.shape_cast %247 : vector<1x16x4xf32> to vector<16x4xf32>
    %c1_272 = arith.constant 1 : index
    %c28_273 = arith.constant 28 : index
    %c0_274 = arith.constant 0 : index
    %249 = vector.load %arg7[%c1_272, %c28_273, %c0_274] : memref<2x75x4xf32, #tpu.memory_space<vmem>>, vector<1x16x4xf32>
    %250 = vector.shape_cast %249 : vector<1x16x4xf32> to vector<16x4xf32>
    %c1_275 = arith.constant 1 : index
    %c29_276 = arith.constant 29 : index
    %c0_277 = arith.constant 0 : index
    %251 = vector.load %arg7[%c1_275, %c29_276, %c0_277] : memref<2x75x4xf32, #tpu.memory_space<vmem>>, vector<1x16x4xf32>
    %252 = vector.shape_cast %251 : vector<1x16x4xf32> to vector<16x4xf32>
    %c1_278 = arith.constant 1 : index
    %c30_279 = arith.constant 30 : index
    %c0_280 = arith.constant 0 : index
    %253 = vector.load %arg7[%c1_278, %c30_279, %c0_280] : memref<2x75x4xf32, #tpu.memory_space<vmem>>, vector<1x16x4xf32>
    %254 = vector.shape_cast %253 : vector<1x16x4xf32> to vector<16x4xf32>
    %c1_281 = arith.constant 1 : index
    %c31_282 = arith.constant 31 : index
    %c0_283 = arith.constant 0 : index
    %255 = vector.load %arg7[%c1_281, %c31_282, %c0_283] : memref<2x75x4xf32, #tpu.memory_space<vmem>>, vector<1x16x4xf32>
    %256 = vector.shape_cast %255 : vector<1x16x4xf32> to vector<16x4xf32>
    %257 = tpu.concatenate %194, %196, %198, %200, %202, %204, %206, %208, %210, %212, %214, %216, %218, %220, %222, %224 in 1 : vector<16x4xf32>, vector<16x4xf32>, vector<16x4xf32>, vector<16x4xf32>, vector<16x4xf32>, vector<16x4xf32>, vector<16x4xf32>, vector<16x4xf32>, vector<16x4xf32>, vector<16x4xf32>, vector<16x4xf32>, vector<16x4xf32>, vector<16x4xf32>, vector<16x4xf32>, vector<16x4xf32>, vector<16x4xf32> -> vector<16x64xf32>
    %258 = tpu.concatenate %226, %228, %230, %232, %234, %236, %238, %240, %242, %244, %246, %248, %250, %252, %254, %256 in 1 : vector<16x4xf32>, vector<16x4xf32>, vector<16x4xf32>, vector<16x4xf32>, vector<16x4xf32>, vector<16x4xf32>, vector<16x4xf32>, vector<16x4xf32>, vector<16x4xf32>, vector<16x4xf32>, vector<16x4xf32>, vector<16x4xf32>, vector<16x4xf32>, vector<16x4xf32>, vector<16x4xf32>, vector<16x4xf32> -> vector<16x64xf32>
    %259 = tpu.concatenate %257, %258 in 1 : vector<16x64xf32>, vector<16x64xf32> -> vector<16x128xf32>
    %260 = arith.truncf %259 : vector<16x128xf32> to vector<16x128xbf16>
    %c16_284 = arith.constant 16 : index
    %c0_285 = arith.constant 0 : index
    %261 = vector.load %arg9[%c16_284, %c0_285] : memref<32x256xbf16, #tpu.memory_space<vmem>>, vector<16x128xbf16>
    tpu.vector_store %arg9[%c16_284, %c0_285], %260 {strides = array<i32>} : memref<32x256xbf16, #tpu.memory_space<vmem>>, vector<16x128xbf16>,
    %c1_286 = arith.constant 1 : index
    %c0_287 = arith.constant 0 : index
    %c0_288 = arith.constant 0 : index
    %262 = vector.load %arg8[%c1_286, %c0_287, %c0_288] : memref<2x20x4xf32, #tpu.memory_space<vmem>>, vector<1x16x4xf32>
    %263 = vector.shape_cast %262 : vector<1x16x4xf32> to vector<16x4xf32>
    %c1_289 = arith.constant 1 : index
    %c1_290 = arith.constant 1 : index
    %c0_291 = arith.constant 0 : index
    %264 = vector.load %arg8[%c1_289, %c1_290, %c0_291] : memref<2x20x4xf32, #tpu.memory_space<vmem>>, vector<1x16x4xf32>
    %265 = vector.shape_cast %264 : vector<1x16x4xf32> to vector<16x4xf32>
    %266 = arith.maximumf %263, %265 : vector<16x4xf32>
    %c1_292 = arith.constant 1 : index
    %c2_293 = arith.constant 2 : index
    %c0_294 = arith.constant 0 : index
    %267 = vector.load %arg8[%c1_292, %c2_293, %c0_294] : memref<2x20x4xf32, #tpu.memory_space<vmem>>, vector<1x16x4xf32>
    %268 = vector.shape_cast %267 : vector<1x16x4xf32> to vector<16x4xf32>
    %269 = arith.maximumf %266, %268 : vector<16x4xf32>
    %c1_295 = arith.constant 1 : index
    %c3_296 = arith.constant 3 : index
    %c0_297 = arith.constant 0 : index
    %270 = vector.load %arg8[%c1_295, %c3_296, %c0_297] : memref<2x20x4xf32, #tpu.memory_space<vmem>>, vector<1x16x4xf32>
    %271 = vector.shape_cast %270 : vector<1x16x4xf32> to vector<16x4xf32>
    %272 = arith.maximumf %269, %271 : vector<16x4xf32>
    %c1_298 = arith.constant 1 : index
    %c4_299 = arith.constant 4 : index
    %c0_300 = arith.constant 0 : index
    %273 = vector.load %arg8[%c1_298, %c4_299, %c0_300] : memref<2x20x4xf32, #tpu.memory_space<vmem>>, vector<1x16x4xf32>
    %274 = vector.shape_cast %273 : vector<1x16x4xf32> to vector<16x4xf32>
    %275 = arith.maximumf %272, %274 : vector<16x4xf32>
    %c1_301 = arith.constant 1 : index
    %c32_302 = arith.constant 32 : index
    %c0_303 = arith.constant 0 : index
    %276 = vector.load %arg7[%c1_301, %c32_302, %c0_303] : memref<2x75x4xf32, #tpu.memory_space<vmem>>, vector<1x16x4xf32>
    %277 = vector.shape_cast %276 : vector<1x16x4xf32> to vector<16x4xf32>
    %c1_304 = arith.constant 1 : index
    %c33_305 = arith.constant 33 : index
    %c0_306 = arith.constant 0 : index
    %278 = vector.load %arg7[%c1_304, %c33_305, %c0_306] : memref<2x75x4xf32, #tpu.memory_space<vmem>>, vector<1x16x4xf32>
    %279 = vector.shape_cast %278 : vector<1x16x4xf32> to vector<16x4xf32>
    %c1_307 = arith.constant 1 : index
    %c34_308 = arith.constant 34 : index
    %c0_309 = arith.constant 0 : index
    %280 = vector.load %arg7[%c1_307, %c34_308, %c0_309] : memref<2x75x4xf32, #tpu.memory_space<vmem>>, vector<1x16x4xf32>
    %281 = vector.shape_cast %280 : vector<1x16x4xf32> to vector<16x4xf32>
    %c1_310 = arith.constant 1 : index
    %c35_311 = arith.constant 35 : index
    %c0_312 = arith.constant 0 : index
    %282 = vector.load %arg7[%c1_310, %c35_311, %c0_312] : memref<2x75x4xf32, #tpu.memory_space<vmem>>, vector<1x16x4xf32>
    %283 = vector.shape_cast %282 : vector<1x16x4xf32> to vector<16x4xf32>
    %c1_313 = arith.constant 1 : index
    %c36_314 = arith.constant 36 : index
    %c0_315 = arith.constant 0 : index
    %284 = vector.load %arg7[%c1_313, %c36_314, %c0_315] : memref<2x75x4xf32, #tpu.memory_space<vmem>>, vector<1x16x4xf32>
    %285 = vector.shape_cast %284 : vector<1x16x4xf32> to vector<16x4xf32>
    %c1_316 = arith.constant 1 : index
    %c37_317 = arith.constant 37 : index
    %c0_318 = arith.constant 0 : index
    %286 = vector.load %arg7[%c1_316, %c37_317, %c0_318] : memref<2x75x4xf32, #tpu.memory_space<vmem>>, vector<1x16x4xf32>
    %287 = vector.shape_cast %286 : vector<1x16x4xf32> to vector<16x4xf32>
    %c1_319 = arith.constant 1 : index
    %c38_320 = arith.constant 38 : index
    %c0_321 = arith.constant 0 : index
    %288 = vector.load %arg7[%c1_319, %c38_320, %c0_321] : memref<2x75x4xf32, #tpu.memory_space<vmem>>, vector<1x16x4xf32>
    %289 = vector.shape_cast %288 : vector<1x16x4xf32> to vector<16x4xf32>
    %c1_322 = arith.constant 1 : index
    %c39_323 = arith.constant 39 : index
    %c0_324 = arith.constant 0 : index
    %290 = vector.load %arg7[%c1_322, %c39_323, %c0_324] : memref<2x75x4xf32, #tpu.memory_space<vmem>>, vector<1x16x4xf32>
    %291 = vector.shape_cast %290 : vector<1x16x4xf32> to vector<16x4xf32>
    %c1_325 = arith.constant 1 : index
    %c40_326 = arith.constant 40 : index
    %c0_327 = arith.constant 0 : index
    %292 = vector.load %arg7[%c1_325, %c40_326, %c0_327] : memref<2x75x4xf32, #tpu.memory_space<vmem>>, vector<1x16x4xf32>
    %293 = vector.shape_cast %292 : vector<1x16x4xf32> to vector<16x4xf32>
    %c1_328 = arith.constant 1 : index
    %c41_329 = arith.constant 41 : index
    %c0_330 = arith.constant 0 : index
    %294 = vector.load %arg7[%c1_328, %c41_329, %c0_330] : memref<2x75x4xf32, #tpu.memory_space<vmem>>, vector<1x16x4xf32>
    %295 = vector.shape_cast %294 : vector<1x16x4xf32> to vector<16x4xf32>
    %c1_331 = arith.constant 1 : index
    %c42_332 = arith.constant 42 : index
    %c0_333 = arith.constant 0 : index
    %296 = vector.load %arg7[%c1_331, %c42_332, %c0_333] : memref<2x75x4xf32, #tpu.memory_space<vmem>>, vector<1x16x4xf32>
    %297 = vector.shape_cast %296 : vector<1x16x4xf32> to vector<16x4xf32>
    %c1_334 = arith.constant 1 : index
    %c43_335 = arith.constant 43 : index
    %c0_336 = arith.constant 0 : index
    %298 = vector.load %arg7[%c1_334, %c43_335, %c0_336] : memref<2x75x4xf32, #tpu.memory_space<vmem>>, vector<1x16x4xf32>
    %299 = vector.shape_cast %298 : vector<1x16x4xf32> to vector<16x4xf32>
    %c1_337 = arith.constant 1 : index
    %c44_338 = arith.constant 44 : index
    %c0_339 = arith.constant 0 : index
    %300 = vector.load %arg7[%c1_337, %c44_338, %c0_339] : memref<2x75x4xf32, #tpu.memory_space<vmem>>, vector<1x16x4xf32>
    %301 = vector.shape_cast %300 : vector<1x16x4xf32> to vector<16x4xf32>
    %c1_340 = arith.constant 1 : index
    %c45_341 = arith.constant 45 : index
    %c0_342 = arith.constant 0 : index
    %302 = vector.load %arg7[%c1_340, %c45_341, %c0_342] : memref<2x75x4xf32, #tpu.memory_space<vmem>>, vector<1x16x4xf32>
    %303 = vector.shape_cast %302 : vector<1x16x4xf32> to vector<16x4xf32>
    %c1_343 = arith.constant 1 : index
    %c46_344 = arith.constant 46 : index
    %c0_345 = arith.constant 0 : index
    %304 = vector.load %arg7[%c1_343, %c46_344, %c0_345] : memref<2x75x4xf32, #tpu.memory_space<vmem>>, vector<1x16x4xf32>
    %305 = vector.shape_cast %304 : vector<1x16x4xf32> to vector<16x4xf32>
    %c1_346 = arith.constant 1 : index
    %c47_347 = arith.constant 47 : index
    %c0_348 = arith.constant 0 : index
    %306 = vector.load %arg7[%c1_346, %c47_347, %c0_348] : memref<2x75x4xf32, #tpu.memory_space<vmem>>, vector<1x16x4xf32>
    %307 = vector.shape_cast %306 : vector<1x16x4xf32> to vector<16x4xf32>
    %c1_349 = arith.constant 1 : index
    %c48_350 = arith.constant 48 : index
    %c0_351 = arith.constant 0 : index
    %308 = vector.load %arg7[%c1_349, %c48_350, %c0_351] : memref<2x75x4xf32, #tpu.memory_space<vmem>>, vector<1x16x4xf32>
    %309 = vector.shape_cast %308 : vector<1x16x4xf32> to vector<16x4xf32>
    %c1_352 = arith.constant 1 : index
    %c49_353 = arith.constant 49 : index
    %c0_354 = arith.constant 0 : index
    %310 = vector.load %arg7[%c1_352, %c49_353, %c0_354] : memref<2x75x4xf32, #tpu.memory_space<vmem>>, vector<1x16x4xf32>
    %311 = vector.shape_cast %310 : vector<1x16x4xf32> to vector<16x4xf32>
    %c1_355 = arith.constant 1 : index
    %c50_356 = arith.constant 50 : index
    %c0_357 = arith.constant 0 : index
    %312 = vector.load %arg7[%c1_355, %c50_356, %c0_357] : memref<2x75x4xf32, #tpu.memory_space<vmem>>, vector<1x16x4xf32>
    %313 = vector.shape_cast %312 : vector<1x16x4xf32> to vector<16x4xf32>
    %c1_358 = arith.constant 1 : index
    %c51_359 = arith.constant 51 : index
    %c0_360 = arith.constant 0 : index
    %314 = vector.load %arg7[%c1_358, %c51_359, %c0_360] : memref<2x75x4xf32, #tpu.memory_space<vmem>>, vector<1x16x4xf32>
    %315 = vector.shape_cast %314 : vector<1x16x4xf32> to vector<16x4xf32>
    %c1_361 = arith.constant 1 : index
    %c52_362 = arith.constant 52 : index
    %c0_363 = arith.constant 0 : index
    %316 = vector.load %arg7[%c1_361, %c52_362, %c0_363] : memref<2x75x4xf32, #tpu.memory_space<vmem>>, vector<1x16x4xf32>
    %317 = vector.shape_cast %316 : vector<1x16x4xf32> to vector<16x4xf32>
    %c1_364 = arith.constant 1 : index
    %c53_365 = arith.constant 53 : index
    %c0_366 = arith.constant 0 : index
    %318 = vector.load %arg7[%c1_364, %c53_365, %c0_366] : memref<2x75x4xf32, #tpu.memory_space<vmem>>, vector<1x16x4xf32>
    %319 = vector.shape_cast %318 : vector<1x16x4xf32> to vector<16x4xf32>
    %c1_367 = arith.constant 1 : index
    %c54_368 = arith.constant 54 : index
    %c0_369 = arith.constant 0 : index
    %320 = vector.load %arg7[%c1_367, %c54_368, %c0_369] : memref<2x75x4xf32, #tpu.memory_space<vmem>>, vector<1x16x4xf32>
    %321 = vector.shape_cast %320 : vector<1x16x4xf32> to vector<16x4xf32>
    %c1_370 = arith.constant 1 : index
    %c55_371 = arith.constant 55 : index
    %c0_372 = arith.constant 0 : index
    %322 = vector.load %arg7[%c1_370, %c55_371, %c0_372] : memref<2x75x4xf32, #tpu.memory_space<vmem>>, vector<1x16x4xf32>
    %323 = vector.shape_cast %322 : vector<1x16x4xf32> to vector<16x4xf32>
    %c1_373 = arith.constant 1 : index
    %c56_374 = arith.constant 56 : index
    %c0_375 = arith.constant 0 : index
    %324 = vector.load %arg7[%c1_373, %c56_374, %c0_375] : memref<2x75x4xf32, #tpu.memory_space<vmem>>, vector<1x16x4xf32>
    %325 = vector.shape_cast %324 : vector<1x16x4xf32> to vector<16x4xf32>
    %c1_376 = arith.constant 1 : index
    %c57_377 = arith.constant 57 : index
    %c0_378 = arith.constant 0 : index
    %326 = vector.load %arg7[%c1_376, %c57_377, %c0_378] : memref<2x75x4xf32, #tpu.memory_space<vmem>>, vector<1x16x4xf32>
    %327 = vector.shape_cast %326 : vector<1x16x4xf32> to vector<16x4xf32>
    %c1_379 = arith.constant 1 : index
    %c58_380 = arith.constant 58 : index
    %c0_381 = arith.constant 0 : index
    %328 = vector.load %arg7[%c1_379, %c58_380, %c0_381] : memref<2x75x4xf32, #tpu.memory_space<vmem>>, vector<1x16x4xf32>
    %329 = vector.shape_cast %328 : vector<1x16x4xf32> to vector<16x4xf32>
    %c1_382 = arith.constant 1 : index
    %c59_383 = arith.constant 59 : index
    %c0_384 = arith.constant 0 : index
    %330 = vector.load %arg7[%c1_382, %c59_383, %c0_384] : memref<2x75x4xf32, #tpu.memory_space<vmem>>, vector<1x16x4xf32>
    %331 = vector.shape_cast %330 : vector<1x16x4xf32> to vector<16x4xf32>
    %cst_385 = arith.constant 0.000000e+00 : f32
    %332 = vector.broadcast %cst_385 : f32 to vector<16x12xf32>
    %333 = tpu.concatenate %277, %279, %281, %283, %285, %287, %289, %291, %293, %295, %297, %299, %301, %303, %305, %307 in 1 : vector<16x4xf32>, vector<16x4xf32>, vector<16x4xf32>, vector<16x4xf32>, vector<16x4xf32>, vector<16x4xf32>, vector<16x4xf32>, vector<16x4xf32>, vector<16x4xf32>, vector<16x4xf32>, vector<16x4xf32>, vector<16x4xf32>, vector<16x4xf32>, vector<16x4xf32>, vector<16x4xf32>, vector<16x4xf32> -> vector<16x64xf32>
    %334 = tpu.concatenate %309, %311, %313, %315, %317, %319, %321, %323, %325, %327, %329, %331, %275, %332 in 1 : vector<16x4xf32>, vector<16x4xf32>, vector<16x4xf32>, vector<16x4xf32>, vector<16x4xf32>, vector<16x4xf32>, vector<16x4xf32>, vector<16x4xf32>, vector<16x4xf32>, vector<16x4xf32>, vector<16x4xf32>, vector<16x4xf32>, vector<16x4xf32>, vector<16x12xf32> -> vector<16x64xf32>
    %335 = tpu.concatenate %333, %334 in 1 : vector<16x64xf32>, vector<16x64xf32> -> vector<16x128xf32>
    %336 = arith.truncf %335 : vector<16x128xf32> to vector<16x128xbf16>
    %c16_386 = arith.constant 16 : index
    %c128_387 = arith.constant 128 : index
    %337 = vector.load %arg9[%c16_386, %c128_387] : memref<32x256xbf16, #tpu.memory_space<vmem>>, vector<16x128xbf16>
    tpu.vector_store %arg9[%c16_386, %c128_387], %336 {strides = array<i32>} : memref<32x256xbf16, #tpu.memory_space<vmem>>, vector<16x128xbf16>,
    %c0_388 = arith.constant 0 : index
    %c0_389 = arith.constant 0 : index
    %338 = vector.load %arg9[%c0_388, %c0_389] : memref<32x256xbf16, #tpu.memory_space<vmem>>, vector<32x256xbf16>
    %c0_390 = arith.constant 0 : index
    %c0_391 = arith.constant 0 : index
    %339 = vector.load %arg2[%c0_390, %c0_391] : memref<256x128xbf16, #tpu.memory_space<vmem>>, vector<256x128xbf16>
    %cst_392 = arith.constant dense<0.000000e+00> : vector<32x128xf32>
    %340 = tpu.matmul %338, %339, %cst_392 {dimension_numbers = #tpu.dot_dimension_numbers<[1], [0], [0], [1], [0, 0, 1, 1], [], []>} : vector<32x256xbf16>, vector<256x128xbf16>, vector<32x128xf32> -> vector<32x128xf32>
    %c0_393 = arith.constant 0 : index
    %c0_394 = arith.constant 0 : index
    %341 = vector.load %arg3[%c0_393, %c0_394] : memref<32x128xf32, #tpu.memory_space<vmem>>, vector<32x128xf32>
    %342 = arith.addf %340, %341 : vector<32x128xf32>
    %c0_395 = arith.constant 0 : index
    %c0_396 = arith.constant 0 : index
    %343 = vector.load %arg4[%c0_395, %c0_396] : memref<32x128xf32, #tpu.memory_space<vmem>>, vector<32x128xf32>
    tpu.vector_store %arg4[%c0_395, %c0_396], %342 {strides = array<i32>} : memref<32x128xf32, #tpu.memory_space<vmem>>, vector<32x128xf32>,
    %cst_397 = arith.constant dense<0.000000e+00> : vector<128xf32>
    %344 = vector.multi_reduction <add>, %342, %cst_397 [0] : vector<32x128xf32> to vector<128xf32>
    %345 = vector.shape_cast %344 : vector<128xf32> to vector<1x128xf32>
    %c0_398 = arith.constant 0 : index
    %c0_399 = arith.constant 0 : index
    %346 = vector.load %arg5[%c0_398, %c0_399] : memref<1x128xf32, #tpu.memory_space<vmem>>, vector<1x128xf32>
    tpu.vector_store %arg5[%c0_398, %c0_399], %345 {strides = array<i32>} : memref<1x128xf32, #tpu.memory_space<vmem>>, vector<1x128xf32>,
    %347 = arith.mulf %342, %342 : vector<32x128xf32>
    %cst_400 = arith.constant dense<0.000000e+00> : vector<128xf32>
    %348 = vector.multi_reduction <add>, %347, %cst_400 [0] : vector<32x128xf32> to vector<128xf32>
    %349 = vector.shape_cast %348 : vector<128xf32> to vector<1x128xf32>
    %c0_401 = arith.constant 0 : index
    %c0_402 = arith.constant 0 : index
    %350 = vector.load %arg6[%c0_401, %c0_402] : memref<1x128xf32, #tpu.memory_space<vmem>>, vector<1x128xf32>
    tpu.vector_store %arg6[%c0_401, %c0_402], %349 {strides = array<i32>} : memref<1x128xf32, #tpu.memory_space<vmem>>, vector<1x128xf32>,
    return
  }
  func.func @transform_0(%arg0: i32) -> (i32, i32, i32) {
    %c0_i32 = arith.constant 0 : i32
    %c0_i32_0 = arith.constant 0 : i32
    %c0_i32_1 = arith.constant 0 : i32
    return %arg0, %c0_i32, %c0_i32_0 : i32, i32, i32
  }
  func.func @transform_1(%arg0: i32) -> (i32, i32) {
    %c0_i32 = arith.constant 0 : i32
    %c0_i32_0 = arith.constant 0 : i32
    %c0_i32_1 = arith.constant 0 : i32
    return %c0_i32, %c0_i32_0 : i32, i32
  }
  func.func @transform_2(%arg0: i32) -> (i32, i32) {
    %c0_i32 = arith.constant 0 : i32
    %c0_i32_0 = arith.constant 0 : i32
    %c0_i32_1 = arith.constant 0 : i32
    return %c0_i32, %c0_i32_0 : i32, i32
  }
  func.func @transform_3(%arg0: i32) -> (i32, i32) {
    %c0_i32 = arith.constant 0 : i32
    %c0_i32_0 = arith.constant 0 : i32
    return %arg0, %c0_i32 : i32, i32
  }
  func.func @transform_4(%arg0: i32) -> (i32, i32) {
    %c0_i32 = arith.constant 0 : i32
    %c0_i32_0 = arith.constant 0 : i32
    return %arg0, %c0_i32 : i32, i32
  }
  func.func @transform_5(%arg0: i32) -> (i32, i32) {
    %c0_i32 = arith.constant 0 : i32
    %c0_i32_0 = arith.constant 0 : i32
    return %arg0, %c0_i32 : i32, i32
  }
}

</mosaic_0001>

<llo_original>
// kernel: inception_forward.3
$region0: #{inception_forward.3}
  #allocation0 [shape = 'u32[]', space=smem, size = 0x4, offset = 0x4, fixed_abs, tag = 'smem constant byte address 0x4 - core index']
  #allocation1 [shape = 'u32[144,128]{1,0:T(1,128)}', space=vmem, size = 0x12000, scoped, tag = 'internal scratch']
  %s0 = inlined_call_operand.vmem [shape: f32[32,128], index: 0, kind: input, shape index: {}, may-alias: {0,3}]
  %s1 = inlined_call_operand.vmem [shape: f32[1,128], index: 1, kind: input, shape index: {}]
  %s2 = inlined_call_operand.vmem [shape: f32[1,128], index: 2, kind: input, shape index: {}]
  %s3 = inlined_call_operand.vmem [shape: f32[32,128], index: 3, kind: output, shape index: {}, may-alias: {0,3}]
  %s4 = sld [smem:[#allocation0]]
  $region22: #{inception_forward.3} parent=0
    _
  %s6 = ssub.s32 1, %s4
  %s7 = scalar_select 0, %s6, %s4
  // Predicated region
  $region2: #{inception_forward.3} parent=0 // pred_check
    _
  $region3: #{inception_forward.3} parent=0 // pred_check_branch
    %9 = sbr.rel (0) target = $region5
  $region4: #{inception_forward.3} parent=0 // pred_region
    _
  $region5: #{inception_forward.3} parent=0 // pred_fallthru
    _
  // Predicated region
  $region6: #{inception_forward.3} parent=0 // pred_check
    _
  $region7: #{inception_forward.3} parent=0 // pred_check_branch
    %11 = sbr.rel (0) target = $region9
  $region8: #{inception_forward.3} parent=0 // pred_region
    _
  $region9: #{inception_forward.3} parent=0 // pred_fallthru
    _
  // Predicated region
  $region10: #{inception_forward.3} parent=0 // pred_check
    _
  $region11: #{inception_forward.3} parent=0 // pred_check_branch
    %13 = sbr.rel (0) target = $region13
  $region12: #{inception_forward.3} parent=0 // pred_region
    _
  $region13: #{inception_forward.3} parent=0 // pred_fallthru
    _
  %v14 = vld [vmem:[%s0] sm:$0xff]
  %v15 = vld [vmem:[%s0 + $0x8] sm:$0xff]
  %v16 = vld [vmem:[%s0 + $0x10] sm:$0xff]
  %v17 = vld [vmem:[%s0 + $0x18] sm:$0xff]
  %v18 = vld [vmem:[%s1] sm:$0x1]
  %v20 = vlaneseq
  %v21 = vshrl.u32 %v20, 7
  %v22 = vsub.s32 0, %v21
  %v23 = vrot.slane %v18, %v22
  %v25 = vmul.f32 %v14, %v23
  %v26 = vmul.f32 %v15, %v23
  %v27 = vmul.f32 %v16, %v23
  %v28 = vmul.f32 %v17, %v23
  %v29 = vld [vmem:[%s2] sm:$0x1]
  %v31 = vlaneseq
  %v32 = vshrl.u32 %v31, 7
  %v33 = vsub.s32 0, %v32
  %v34 = vrot.slane %v29, %v33
  %v36 = vadd.f32 %v25, %v34
  %v37 = vadd.f32 %v26, %v34
  %v38 = vadd.f32 %v27, %v34
  %v39 = vadd.f32 %v28, %v34
  %v40 = vmax.f32 %v36, 0.0
  %v41 = vmax.f32 %v37, 0.0
  %v42 = vmax.f32 %v38, 0.0
  %v43 = vmax.f32 %v39, 0.0
  %44 = vst [vmem:[%s3] sm:$0xff] %v40
  %45 = vst [vmem:[%s3 + $0x8] sm:$0xff] %v41
  %46 = vst [vmem:[%s3 + $0x10] sm:$0xff] %v42
  %47 = vst [vmem:[%s3 + $0x18] sm:$0xff] %v43
  // Predicated region
  $region14: #{inception_forward.3} parent=0 // pred_check
    _
  $region15: #{inception_forward.3} parent=0 // pred_check_branch
    %49 = sbr.rel (0) target = $region17
  $region16: #{inception_forward.3} parent=0 // pred_region
    _
  $region17: #{inception_forward.3} parent=0 // pred_fallthru
    _
  // Predicated region
  $region18: #{inception_forward.3} parent=0 // pred_check
    _
  $region19: #{inception_forward.3} parent=0 // pred_check_branch
    %51 = sbr.rel (0) target = $region21
  $region20: #{inception_forward.3} parent=0 // pred_region
    _
  $region21: #{inception_forward.3} parent=0 // pred_fallthru
    _

// kernel: inception_forward.2
$region0: #{inception_forward.2}
  #allocation0 [shape = 'u32[]', space=smem, size = 0x4, offset = 0x4, fixed_abs, tag = 'smem constant byte address 0x4 - core index']
  #allocation1 [shape = 'u32[144,128]{1,0:T(1,128)}', space=vmem, size = 0x12000, scoped, tag = 'internal scratch']
  #allocation2 [shape = 'f32[2,75,4]{2,1,0:T(8,128)}', space=vmem, size = 0x14000, scoped, tag = 'scratch operand']
  #allocation3 [shape = 'f32[2,20,4]{2,1,0:T(8,128)}', space=vmem, size = 0x6000, scoped, tag = 'scratch operand']
  #allocation4 [shape = 'bf16[32,256]{1,0:T(8,128)(2,1)}', space=vmem, size = 0x4000, scoped, tag = 'scratch operand']
  %s0 = inlined_call_operand.vmem [shape: f32[2,16,4], index: 0, kind: input, shape index: {}]
  %s1 = inlined_call_operand.vmem [shape: bf16[256,128], index: 1, kind: input, shape index: {}]
  %s2 = inlined_call_operand.vmem [shape: f32[32,128], index: 2, kind: input, shape index: {}]
  %s3 = inlined_call_operand.vmem [shape: f32[32,128], index: 3, kind: output, shape index: {0}]
  %s4 = inlined_call_operand.vmem [shape: f32[1,128], index: 4, kind: output, shape index: {1}]
  %s5 = inlined_call_operand.vmem [shape: f32[1,128], index: 5, kind: output, shape index: {2}]
  %6 = xla_tuple %s3, %s4, %s5
  %s7 = sld [smem:[#allocation0]]
  $region38: #{inception_forward.2} parent=0
    _
  %s9 = ssub.s32 1, %s7
  %s10 = scalar_select 0, %s9, %s7
  // Predicated region
  $region2: #{inception_forward.2} parent=0 // pred_check
    _
  $region3: #{inception_forward.2} parent=0 // pred_check_branch
    %12 = sbr.rel (0) target = $region5
  $region4: #{inception_forward.2} parent=0 // pred_region
    _
  $region5: #{inception_forward.2} parent=0 // pred_fallthru
    _
  // Predicated region
  $region6: #{inception_forward.2} parent=0 // pred_check
    _
  $region7: #{inception_forward.2} parent=0 // pred_check_branch
    %14 = sbr.rel (0) target = $region9
  $region8: #{inception_forward.2} parent=0 // pred_region
    _
  $region9: #{inception_forward.2} parent=0 // pred_fallthru
    _
  // Predicated region
  $region10: #{inception_forward.2} parent=0 // pred_check
    _
  $region11: #{inception_forward.2} parent=0 // pred_check_branch
    %16 = sbr.rel (0) target = $region13
  $region12: #{inception_forward.2} parent=0 // pred_region
    _
  $region13: #{inception_forward.2} parent=0 // pred_fallthru
    _
  %v18 = vld [vmem:[%s0] sm:$0xff]
  %v19 = vld [vmem:[%s0 + $0x8] sm:$0xff]
  %vm20 = vcmask 31744
  %21 = vst.msk [vmem:[#allocation2] sm:$0xff] %vm20, 0.0
  %22 = vst.msk [vmem:[#allocation2 + $0x8] sm:$0xff] %vm20, 0.0
  %23 = vst.msk [vmem:[#allocation2 + $0x10] sm:$0xff] %vm20, 0.0
  %vm24 = vcmask 28672
  %25 = vst.msk [vmem:[#allocation2 + $0x18] sm:$0x1f] %vm24, 0.0
  %26 = vst.msk [vmem:[#allocation2 + $0x2d] sm:$0xff] %vm20, 0.0
  %27 = vst.msk [vmem:[#allocation2 + $0x35] sm:$0xff] %vm20, 0.0
  %28 = vst.msk [vmem:[#allocation2 + $0x3d] sm:$0xff] %vm20, 0.0
  %vm29 = vcmask 29696
  %30 = vst.msk [vmem:[#allocation2 + $0x45] sm:$0x3f] %vm29, 0.0
  %31 = vst.msk [vmem:[#allocation2 + $0x1d] sm:$0xff] %vm20, %v18
  %32 = vst.msk [vmem:[#allocation2 + $0x25] sm:$0xff] %vm20, %v19
  %vm33 = vcmask 25600
  %34 = vst.msk [vmem:[#allocation3] sm:$0x3] %vm33, -inf
  %35 = vst.msk [vmem:[#allocation3 + $0x12] sm:$0x3] %vm33, -inf
  %36 = vst.msk [vmem:[#allocation3 + $0x2] sm:$0xff] %vm20, %v18
  %37 = vst.msk [vmem:[#allocation3 + $0xa] sm:$0xff] %vm20, %v19
  %s38 = scalar_lea.vmem %s0, 16
  %v39 = vld [vmem:[%s38] sm:$0xff]
  %v40 = vld [vmem:[%s38 + $0x8] sm:$0xff]
  %s41 = scalar_lea.vmem [#allocation2], 80
  %42 = vst.msk [vmem:[%s41] sm:$0xff] %vm20, 0.0
  %43 = vst.msk [vmem:[%s41 + $0x8] sm:$0xff] %vm20, 0.0
  %44 = vst.msk [vmem:[%s41 + $0x10] sm:$0xff] %vm20, 0.0
  %45 = vst.msk [vmem:[%s41 + $0x18] sm:$0x1f] %vm24, 0.0
  %46 = vst.msk [vmem:[%s41 + $0x2d] sm:$0xff] %vm20, 0.0
  %47 = vst.msk [vmem:[%s41 + $0x35] sm:$0xff] %vm20, 0.0
  %48 = vst.msk [vmem:[%s41 + $0x3d] sm:$0xff] %vm20, 0.0
  %49 = vst.msk [vmem:[%s41 + $0x45] sm:$0x3f] %vm29, 0.0
  %50 = vst.msk [vmem:[%s41 + $0x1d] sm:$0xff] %vm20, %v39
  %51 = vst.msk [vmem:[%s41 + $0x25] sm:$0xff] %vm20, %v40
  %s52 = scalar_lea.vmem [#allocation3], 24
  %53 = vst.msk [vmem:[%s52] sm:$0x3] %vm33, -inf
  %54 = vst.msk [vmem:[%s52 + $0x12] sm:$0x3] %vm33, -inf
  %55 = vst.msk [vmem:[%s52 + $0x2] sm:$0xff] %vm20, %v39
  %56 = vst.msk [vmem:[%s52 + $0xa] sm:$0xff] %vm20, %v40
  %v57 = vld [vmem:[#allocation2] sm:$0xff]
  %v58 = vld [vmem:[#allocation2 + $0x8] sm:$0xff]
  %v59 = vld [vmem:[#allocation2 + $0x1] sm:$0xff]
  %v60 = vld [vmem:[#allocation2 + $0x9] sm:$0xff]
  %v61 = vld [vmem:[#allocation2 + $0x2] sm:$0xff]
  %v62 = vld [vmem:[#allocation2 + $0xa] sm:$0xff]
  %v63 = vld [vmem:[#allocation2 + $0x3] sm:$0xff]
  %v64 = vld [vmem:[#allocation2 + $0xb] sm:$0xff]
  %v65 = vld [vmem:[#allocation2 + $0x4] sm:$0xff]
  %v66 = vld [vmem:[#allocation2 + $0xc] sm:$0xff]
  %v67 = vld [vmem:[#allocation2 + $0x5] sm:$0xff]
  %v68 = vld [vmem:[#allocation2 + $0xd] sm:$0xff]
  %v69 = vld [vmem:[#allocation2 + $0x6] sm:$0xff]
  %v70 = vld [vmem:[#allocation2 + $0xe] sm:$0xff]
  %v71 = vld [vmem:[#allocation2 + $0x7] sm:$0xff]
  %v72 = vld [vmem:[#allocation2 + $0xf] sm:$0xff]
  %v73 = vld [vmem:[#allocation2 + $0x10] sm:$0xff]
  %v74 = vld [vmem:[#allocation2 + $0x11] sm:$0xff]
  %v75 = vld [vmem:[#allocation2 + $0x12] sm:$0xff]
  %v76 = vld [vmem:[#allocation2 + $0x13] sm:$0xff]
  %v77 = vld [vmem:[#allocation2 + $0x14] sm:$0xff]
  %v78 = vld [vmem:[#allocation2 + $0x15] sm:$0xff]
  %v79 = vld [vmem:[#allocation2 + $0x16] sm:$0xff]
  %v80 = vld [vmem:[#allocation2 + $0x17] sm:$0xff]
  %v81 = vld [vmem:[#allocation2 + $0x18] sm:$0xff]
  %v82 = vld [vmem:[#allocation2 + $0x19] sm:$0xff]
  %v83 = vld [vmem:[#allocation2 + $0x1a] sm:$0xff]
  %v84 = vld [vmem:[#allocation2 + $0x1b] sm:$0xff]
  %v85 = vld [vmem:[#allocation2 + $0x1c] sm:$0xff]
  %v86 = vld [vmem:[#allocation2 + $0x1d] sm:$0xff]
  %v87 = vld [vmem:[#allocation2 + $0x1e] sm:$0xff]
  %v88 = vld [vmem:[#allocation2 + $0x1f] sm:$0xff]
  %v89 = vld [vmem:[#allocation2 + $0x20] sm:$0xff]
  %v90 = vld [vmem:[#allocation2 + $0x21] sm:$0xff]
  %v91 = vld [vmem:[#allocation2 + $0x22] sm:$0xff]
  %v92 = vld [vmem:[#allocation2 + $0x23] sm:$0xff]
  %v93 = vld [vmem:[#allocation2 + $0x24] sm:$0xff]
  %v94 = vld [vmem:[#allocation2 + $0x25] sm:$0xff]
  %v95 = vld [vmem:[#allocation2 + $0x26] sm:$0xff]
  %v96 = vld [vmem:[#allocation2 + $0x27] sm:$0xff]
  %99 = vrot.lane.b32.xlu0 %v59, 4
  %v100 = vpop.permute.xlu0 %99
  %101 = vrot.lane.b32.xlu0 %v60, 4
  %v102 = vpop.permute.xlu0 %101
  %107 = vrot.lane.b32.xlu0 %v61, 8
  %v108 = vpop.permute.xlu0 %107
  %109 = vrot.lane.b32.xlu0 %v62, 8
  %v110 = vpop.permute.xlu0 %109
  %115 = vrot.lane.b32.xlu0 %v63, 12
  %v116 = vpop.permute.xlu0 %115
  %117 = vrot.lane.b32.xlu0 %v64, 12
  %v118 = vpop.permute.xlu0 %117
  %123 = vrot.lane.b32.xlu0 %v65, 16
  %v124 = vpop.permute.xlu0 %123
  %125 = vrot.lane.b32.xlu0 %v66, 16
  %v126 = vpop.permute.xlu0 %125
  %131 = vrot.lane.b32.xlu0 %v67, 20
  %v132 = vpop.permute.xlu0 %131
  %133 = vrot.lane.b32.xlu0 %v68, 20
  %v134 = vpop.permute.xlu0 %133
  %139 = vrot.lane.b32.xlu0 %v69, 24
  %v140 = vpop.permute.xlu0 %139
  %141 = vrot.lane.b32.xlu0 %v70, 24
  %v142 = vpop.permute.xlu0 %141
  %147 = vrot.lane.b32.xlu0 %v71, 28
  %v148 = vpop.permute.xlu0 %147
  %149 = vrot.lane.b32.xlu0 %v72, 28
  %v150 = vpop.permute.xlu0 %149
  %155 = vrot.lane.b32.xlu0 %v58, 32
  %v156 = vpop.permute.xlu0 %155
  %157 = vrot.lane.b32.xlu0 %v73, 32
  %v158 = vpop.permute.xlu0 %157
  %162 = vrot.lane.b32.xlu0 %v60, 36
  %v163 = vpop.permute.xlu0 %162
  %164 = vrot.lane.b32.xlu0 %v74, 36
  %v165 = vpop.permute.xlu0 %164
  %169 = vrot.lane.b32.xlu0 %v62, 40
  %v170 = vpop.permute.xlu0 %169
  %171 = vrot.lane.b32.xlu0 %v75, 40
  %v172 = vpop.permute.xlu0 %171
  %176 = vrot.lane.b32.xlu0 %v64, 44
  %v177 = vpop.permute.xlu0 %176
  %178 = vrot.lane.b32.xlu0 %v76, 44
  %v179 = vpop.permute.xlu0 %178
  %183 = vrot.lane.b32.xlu0 %v66, 48
  %v184 = vpop.permute.xlu0 %183
  %185 = vrot.lane.b32.xlu0 %v77, 48
  %v186 = vpop.permute.xlu0 %185
  %190 = vrot.lane.b32.xlu0 %v68, 52
  %v191 = vpop.permute.xlu0 %190
  %192 = vrot.lane.b32.xlu0 %v78, 52
  %v193 = vpop.permute.xlu0 %192
  %197 = vrot.lane.b32.xlu0 %v70, 56
  %v198 = vpop.permute.xlu0 %197
  %199 = vrot.lane.b32.xlu0 %v79, 56
  %v200 = vpop.permute.xlu0 %199
  %204 = vrot.lane.b32.xlu0 %v72, 60
  %v205 = vpop.permute.xlu0 %204
  %206 = vrot.lane.b32.xlu0 %v80, 60
  %v207 = vpop.permute.xlu0 %206
  %v210 = vsel %vm20, %v57, %v100
  %v211 = vsel %vm20, %v58, %v102
  %vm212 = vcmask 64512
  %v213 = vsel %vm212, %v210, %v108
  %v214 = vsel %vm212, %v211, %v110
  %vm215 = vcmask 97280
  %v216 = vsel %vm215, %v213, %v116
  %v217 = vsel %vm215, %v214, %v118
  %vm218 = vcmask 130048
  %v219 = vsel %vm218, %v216, %v124
  %v220 = vsel %vm218, %v217, %v126
  %vm221 = vcmask 162816
  %v222 = vsel %vm221, %v219, %v132
  %v223 = vsel %vm221, %v220, %v134
  %vm224 = vcmask 195584
  %v225 = vsel %vm224, %v222, %v140
  %v226 = vsel %vm224, %v223, %v142
  %vm227 = vcmask 228352
  %v228 = vsel %vm227, %v225, %v148
  %v229 = vsel %vm227, %v226, %v150
  %vm230 = vcmask 261120
  %v231 = vsel %vm230, %v228, %v156
  %v232 = vsel %vm230, %v229, %v158
  %vm233 = vcmask 293888
  %v234 = vsel %vm233, %v231, %v163
  %v235 = vsel %vm233, %v232, %v165
  %vm236 = vcmask 326656
  %v237 = vsel %vm236, %v234, %v170
  %v238 = vsel %vm236, %v235, %v172
  %vm239 = vcmask 359424
  %v240 = vsel %vm239, %v237, %v177
  %v241 = vsel %vm239, %v238, %v179
  %vm242 = vcmask 392192
  %v243 = vsel %vm242, %v240, %v184
  %v244 = vsel %vm242, %v241, %v186
  %vm245 = vcmask 424960
  %v246 = vsel %vm245, %v243, %v191
  %v247 = vsel %vm245, %v244, %v193
  %vm248 = vcmask 457728
  %v249 = vsel %vm248, %v246, %v198
  %v250 = vsel %vm248, %v247, %v200
  %vm251 = vcmask 490496
  %v252 = vsel %vm251, %v249, %v205
  %v253 = vsel %vm251, %v250, %v207
  %255 = vrot.lane.b32.xlu0 %v74, 4
  %v256 = vpop.permute.xlu0 %255
  %257 = vrot.lane.b32.xlu0 %v82, 4
  %v258 = vpop.permute.xlu0 %257
  %262 = vrot.lane.b32.xlu0 %v75, 8
  %v263 = vpop.permute.xlu0 %262
  %264 = vrot.lane.b32.xlu0 %v83, 8
  %v265 = vpop.permute.xlu0 %264
  %269 = vrot.lane.b32.xlu0 %v76, 12
  %v270 = vpop.permute.xlu0 %269
  %271 = vrot.lane.b32.xlu0 %v84, 12
  %v272 = vpop.permute.xlu0 %271
  %276 = vrot.lane.b32.xlu0 %v77, 16
  %v277 = vpop.permute.xlu0 %276
  %278 = vrot.lane.b32.xlu0 %v85, 16
  %v279 = vpop.permute.xlu0 %278
  %283 = vrot.lane.b32.xlu0 %v78, 20
  %v284 = vpop.permute.xlu0 %283
  %285 = vrot.lane.b32.xlu0 %v86, 20
  %v286 = vpop.permute.xlu0 %285
  %290 = vrot.lane.b32.xlu0 %v79, 24
  %v291 = vpop.permute.xlu0 %290
  %292 = vrot.lane.b32.xlu0 %v87, 24
  %v293 = vpop.permute.xlu0 %292
  %297 = vrot.lane.b32.xlu0 %v80, 28
  %v298 = vpop.permute.xlu0 %297
  %299 = vrot.lane.b32.xlu0 %v88, 28
  %v300 = vpop.permute.xlu0 %299
  %305 = vrot.lane.b32.xlu0 %v81, 32
  %v306 = vpop.permute.xlu0 %305
  %307 = vrot.lane.b32.xlu0 %v89, 32
  %v308 = vpop.permute.xlu0 %307
  %312 = vrot.lane.b32.xlu0 %v82, 36
  %v313 = vpop.permute.xlu0 %312
  %314 = vrot.lane.b32.xlu0 %v90, 36
  %v315 = vpop.permute.xlu0 %314
  %319 = vrot.lane.b32.xlu0 %v83, 40
  %v320 = vpop.permute.xlu0 %319
  %321 = vrot.lane.b32.xlu0 %v91, 40
  %v322 = vpop.permute.xlu0 %321
  %326 = vrot.lane.b32.xlu0 %v84, 44
  %v327 = vpop.permute.xlu0 %326
  %328 = vrot.lane.b32.xlu0 %v92, 44
  %v329 = vpop.permute.xlu0 %328
  %333 = vrot.lane.b32.xlu0 %v85, 48
  %v334 = vpop.permute.xlu0 %333
  %335 = vrot.lane.b32.xlu0 %v93, 48
  %v336 = vpop.permute.xlu0 %335
  %340 = vrot.lane.b32.xlu0 %v86, 52
  %v341 = vpop.permute.xlu0 %340
  %342 = vrot.lane.b32.xlu0 %v94, 52
  %v343 = vpop.permute.xlu0 %342
  %347 = vrot.lane.b32.xlu0 %v87, 56
  %v348 = vpop.permute.xlu0 %347
  %349 = vrot.lane.b32.xlu0 %v95, 56
  %v350 = vpop.permute.xlu0 %349
  %354 = vrot.lane.b32.xlu0 %v88, 60
  %v355 = vpop.permute.xlu0 %354
  %356 = vrot.lane.b32.xlu0 %v96, 60
  %v357 = vpop.permute.xlu0 %356
  %v360 = vsel %vm20, %v73, %v256
  %v361 = vsel %vm20, %v81, %v258
  %v362 = vsel %vm212, %v360, %v263
  %v363 = vsel %vm212, %v361, %v265
  %v364 = vsel %vm215, %v362, %v270
  %v365 = vsel %vm215, %v363, %v272
  %v366 = vsel %vm218, %v364, %v277
  %v367 = vsel %vm218, %v365, %v279
  %v368 = vsel %vm221, %v366, %v284
  %v369 = vsel %vm221, %v367, %v286
  %v370 = vsel %vm224, %v368, %v291
  %v371 = vsel %vm224, %v369, %v293
  %v372 = vsel %vm227, %v370, %v298
  %v373 = vsel %vm227, %v371, %v300
  %v374 = vsel %vm230, %v372, %v306
  %v375 = vsel %vm230, %v373, %v308
  %v376 = vsel %vm233, %v374, %v313
  %v377 = vsel %vm233, %v375, %v315
  %v378 = vsel %vm236, %v376, %v320
  %v379 = vsel %vm236, %v377, %v322
  %v380 = vsel %vm239, %v378, %v327
  %v381 = vsel %vm239, %v379, %v329
  %v382 = vsel %vm242, %v380, %v334
  %v383 = vsel %vm242, %v381, %v336
  %v384 = vsel %vm245, %v382, %v341
  %v385 = vsel %vm245, %v383, %v343
  %v386 = vsel %vm248, %v384, %v348
  %v387 = vsel %vm248, %v385, %v350
  %v388 = vsel %vm251, %v386, %v355
  %v389 = vsel %vm251, %v387, %v357
  %392 = vrot.lane.b32.xlu0 %v388, 64
  %v393 = vpop.permute.xlu0 %392
  %394 = vrot.lane.b32.xlu0 %v389, 64
  %v395 = vpop.permute.xlu0 %394
  %vm398 = vcmask 523264
  %v399 = vsel %vm398, %v252, %v393
  %v400 = vsel %vm398, %v253, %v395
  %v401 = vpack.c.bf16 %v400, %v399
  %v403 = vunpack.c.l.b16 %v401
  %v404 = vunpack.c.h.b16 %v401
  %v405 = vpack.c.b16 %v403, %v403
  %v406 = vpack.c.b16 %v404, %v404
  %409 = vst [vmem:[#allocation4] sm:$0xf] %v405
  %410 = vst [vmem:[#allocation4 + $0x8] sm:$0xf] %v406
  %v411 = vld [vmem:[#allocation3] sm:$0xff]
  %v412 = vld [vmem:[#allocation3 + $0x8] sm:$0xff]
  %v413 = vld [vmem:[#allocation3 + $0x1] sm:$0xff]
  %v414 = vld [vmem:[#allocation3 + $0x9] sm:$0xff]
  %v415 = vmax.f32 %v411, %v413
  %v416 = vmax.f32 %v412, %v414
  %v417 = vld [vmem:[#allocation3 + $0x2] sm:$0xff]
  %v418 = vld [vmem:[#allocation3 + $0xa] sm:$0xff]
  %v419 = vmax.f32 %v415, %v417
  %v420 = vmax.f32 %v416, %v418
  %v421 = vld [vmem:[#allocation3 + $0x3] sm:$0xff]
  %v422 = vld [vmem:[#allocation3 + $0xb] sm:$0xff]
  %v423 = vmax.f32 %v419, %v421
  %v424 = vmax.f32 %v420, %v422
  %v425 = vld [vmem:[#allocation3 + $0x4] sm:$0xff]
  %v426 = vld [vmem:[#allocation3 + $0xc] sm:$0xff]
  %v427 = vmax.f32 %v423, %v425
  %v428 = vmax.f32 %v424, %v426
  %v429 = vld [vmem:[#allocation2 + $0x20] sm:$0xff]
  %v430 = vld [vmem:[#allocation2 + $0x28] sm:$0xff]
  %v431 = vld [vmem:[#allocation2 + $0x21] sm:$0xff]
  %v432 = vld [vmem:[#allocation2 + $0x29] sm:$0xff]
  %v433 = vld [vmem:[#allocation2 + $0x22] sm:$0xff]
  %v434 = vld [vmem:[#allocation2 + $0x2a] sm:$0xff]
  %v435 = vld [vmem:[#allocation2 + $0x23] sm:$0xff]
  %v436 = vld [vmem:[#allocation2 + $0x2b] sm:$0xff]
  %v437 = vld [vmem:[#allocation2 + $0x24] sm:$0xff]
  %v438 = vld [vmem:[#allocation2 + $0x2c] sm:$0xff]
  %v439 = vld [vmem:[#allocation2 + $0x25] sm:$0xff]
  %v440 = vld [vmem:[#allocation2 + $0x2d] sm:$0xff]
  %v441 = vld [vmem:[#allocation2 + $0x26] sm:$0xff]
  %v442 = vld [vmem:[#allocation2 + $0x2e] sm:$0xff]
  %v443 = vld [vmem:[#allocation2 + $0x27] sm:$0xff]
  %v444 = vld [vmem:[#allocation2 + $0x2f] sm:$0xff]
  %v445 = vld [vmem:[#allocation2 + $0x30] sm:$0xff]
  %v446 = vld [vmem:[#allocation2 + $0x31] sm:$0xff]
  %v447 = vld [vmem:[#allocation2 + $0x32] sm:$0xff]
  %v448 = vld [vmem:[#allocation2 + $0x33] sm:$0xff]
  %v449 = vld [vmem:[#allocation2 + $0x34] sm:$0xff]
  %v450 = vld [vmem:[#allocation2 + $0x35] sm:$0xff]
  %v451 = vld [vmem:[#allocation2 + $0x36] sm:$0xff]
  %v452 = vld [vmem:[#allocation2 + $0x37] sm:$0xff]
  %v453 = vld [vmem:[#allocation2 + $0x38] sm:$0xff]
  %v454 = vld [vmem:[#allocation2 + $0x39] sm:$0xff]
  %v455 = vld [vmem:[#allocation2 + $0x3a] sm:$0xff]
  %v456 = vld [vmem:[#allocation2 + $0x3b] sm:$0xff]
  %v457 = vld [vmem:[#allocation2 + $0x3c] sm:$0xff]
  %v458 = vld [vmem:[#allocation2 + $0x3d] sm:$0xff]
  %v459 = vld [vmem:[#allocation2 + $0x3e] sm:$0xff]
  %v460 = vld [vmem:[#allocation2 + $0x3f] sm:$0xff]
  %v461 = vld [vmem:[#allocation2 + $0x40] sm:$0xff]
  %v462 = vld [vmem:[#allocation2 + $0x41] sm:$0xff]
  %v463 = vld [vmem:[#allocation2 + $0x42] sm:$0xff]
  %v464 = vld [vmem:[#allocation2 + $0x43] sm:$0xff]
  %467 = vrot.lane.b32.xlu0 %v431, 4
  %v468 = vpop.permute.xlu0 %467
  %469 = vrot.lane.b32.xlu0 %v432, 4
  %v470 = vpop.permute.xlu0 %469
  %475 = vrot.lane.b32.xlu0 %v433, 8
  %v476 = vpop.permute.xlu0 %475
  %477 = vrot.lane.b32.xlu0 %v434, 8
  %v478 = vpop.permute.xlu0 %477
  %483 = vrot.lane.b32.xlu0 %v435, 12
  %v484 = vpop.permute.xlu0 %483
  %485 = vrot.lane.b32.xlu0 %v436, 12
  %v486 = vpop.permute.xlu0 %485
  %491 = vrot.lane.b32.xlu0 %v437, 16
  %v492 = vpop.permute.xlu0 %491
  %493 = vrot.lane.b32.xlu0 %v438, 16
  %v494 = vpop.permute.xlu0 %493
  %499 = vrot.lane.b32.xlu0 %v439, 20
  %v500 = vpop.permute.xlu0 %499
  %501 = vrot.lane.b32.xlu0 %v440, 20
  %v502 = vpop.permute.xlu0 %501
  %507 = vrot.lane.b32.xlu0 %v441, 24
  %v508 = vpop.permute.xlu0 %507
  %509 = vrot.lane.b32.xlu0 %v442, 24
  %v510 = vpop.permute.xlu0 %509
  %515 = vrot.lane.b32.xlu0 %v443, 28
  %v516 = vpop.permute.xlu0 %515
  %517 = vrot.lane.b32.xlu0 %v444, 28
  %v518 = vpop.permute.xlu0 %517
  %523 = vrot.lane.b32.xlu0 %v430, 32
  %v524 = vpop.permute.xlu0 %523
  %525 = vrot.lane.b32.xlu0 %v445, 32
  %v526 = vpop.permute.xlu0 %525
  %530 = vrot.lane.b32.xlu0 %v432, 36
  %v531 = vpop.permute.xlu0 %530
  %532 = vrot.lane.b32.xlu0 %v446, 36
  %v533 = vpop.permute.xlu0 %532
  %537 = vrot.lane.b32.xlu0 %v434, 40
  %v538 = vpop.permute.xlu0 %537
  %539 = vrot.lane.b32.xlu0 %v447, 40
  %v540 = vpop.permute.xlu0 %539
  %544 = vrot.lane.b32.xlu0 %v436, 44
  %v545 = vpop.permute.xlu0 %544
  %546 = vrot.lane.b32.xlu0 %v448, 44
  %v547 = vpop.permute.xlu0 %546
  %551 = vrot.lane.b32.xlu0 %v438, 48
  %v552 = vpop.permute.xlu0 %551
  %553 = vrot.lane.b32.xlu0 %v449, 48
  %v554 = vpop.permute.xlu0 %553
  %558 = vrot.lane.b32.xlu0 %v440, 52
  %v559 = vpop.permute.xlu0 %558
  %560 = vrot.lane.b32.xlu0 %v450, 52
  %v561 = vpop.permute.xlu0 %560
  %565 = vrot.lane.b32.xlu0 %v442, 56
  %v566 = vpop.permute.xlu0 %565
  %567 = vrot.lane.b32.xlu0 %v451, 56
  %v568 = vpop.permute.xlu0 %567
  %572 = vrot.lane.b32.xlu0 %v444, 60
  %v573 = vpop.permute.xlu0 %572
  %574 = vrot.lane.b32.xlu0 %v452, 60
  %v575 = vpop.permute.xlu0 %574
  %v578 = vsel %vm20, %v429, %v468
  %v579 = vsel %vm20, %v430, %v470
  %v580 = vsel %vm212, %v578, %v476
  %v581 = vsel %vm212, %v579, %v478
  %v582 = vsel %vm215, %v580, %v484
  %v583 = vsel %vm215, %v581, %v486
  %v584 = vsel %vm218, %v582, %v492
  %v585 = vsel %vm218, %v583, %v494
  %v586 = vsel %vm221, %v584, %v500
  %v587 = vsel %vm221, %v585, %v502
  %v588 = vsel %vm224, %v586, %v508
  %v589 = vsel %vm224, %v587, %v510
  %v590 = vsel %vm227, %v588, %v516
  %v591 = vsel %vm227, %v589, %v518
  %v592 = vsel %vm230, %v590, %v524
  %v593 = vsel %vm230, %v591, %v526
  %v594 = vsel %vm233, %v592, %v531
  %v595 = vsel %vm233, %v593, %v533
  %v596 = vsel %vm236, %v594, %v538
  %v597 = vsel %vm236, %v595, %v540
  %v598 = vsel %vm239, %v596, %v545
  %v599 = vsel %vm239, %v597, %v547
  %v600 = vsel %vm242, %v598, %v552
  %v601 = vsel %vm242, %v599, %v554
  %v602 = vsel %vm245, %v600, %v559
  %v603 = vsel %vm245, %v601, %v561
  %v604 = vsel %vm248, %v602, %v566
  %v605 = vsel %vm248, %v603, %v568
  %v606 = vsel %vm251, %v604, %v573
  %v607 = vsel %vm251, %v605, %v575
  %609 = vrot.lane.b32.xlu0 %v446, 4
  %v610 = vpop.permute.xlu0 %609
  %611 = vrot.lane.b32.xlu0 %v454, 4
  %v612 = vpop.permute.xlu0 %611
  %616 = vrot.lane.b32.xlu0 %v447, 8
  %v617 = vpop.permute.xlu0 %616
  %618 = vrot.lane.b32.xlu0 %v455, 8
  %v619 = vpop.permute.xlu0 %618
  %623 = vrot.lane.b32.xlu0 %v448, 12
  %v624 = vpop.permute.xlu0 %623
  %625 = vrot.lane.b32.xlu0 %v456, 12
  %v626 = vpop.permute.xlu0 %625
  %630 = vrot.lane.b32.xlu0 %v449, 16
  %v631 = vpop.permute.xlu0 %630
  %632 = vrot.lane.b32.xlu0 %v457, 16
  %v633 = vpop.permute.xlu0 %632
  %637 = vrot.lane.b32.xlu0 %v450, 20
  %v638 = vpop.permute.xlu0 %637
  %639 = vrot.lane.b32.xlu0 %v458, 20
  %v640 = vpop.permute.xlu0 %639
  %644 = vrot.lane.b32.xlu0 %v451, 24
  %v645 = vpop.permute.xlu0 %644
  %646 = vrot.lane.b32.xlu0 %v459, 24
  %v647 = vpop.permute.xlu0 %646
  %651 = vrot.lane.b32.xlu0 %v452, 28
  %v652 = vpop.permute.xlu0 %651
  %653 = vrot.lane.b32.xlu0 %v460, 28
  %v654 = vpop.permute.xlu0 %653
  %659 = vrot.lane.b32.xlu0 %v453, 32
  %v660 = vpop.permute.xlu0 %659
  %661 = vrot.lane.b32.xlu0 %v461, 32
  %v662 = vpop.permute.xlu0 %661
  %666 = vrot.lane.b32.xlu0 %v454, 36
  %v667 = vpop.permute.xlu0 %666
  %668 = vrot.lane.b32.xlu0 %v462, 36
  %v669 = vpop.permute.xlu0 %668
  %673 = vrot.lane.b32.xlu0 %v455, 40
  %v674 = vpop.permute.xlu0 %673
  %675 = vrot.lane.b32.xlu0 %v463, 40
  %v676 = vpop.permute.xlu0 %675
  %680 = vrot.lane.b32.xlu0 %v456, 44
  %v681 = vpop.permute.xlu0 %680
  %682 = vrot.lane.b32.xlu0 %v464, 44
  %v683 = vpop.permute.xlu0 %682
  %688 = vrot.lane.b32.xlu0 %v427, 48
  %v689 = vpop.permute.xlu0 %688
  %690 = vrot.lane.b32.xlu0 %v428, 48
  %v691 = vpop.permute.xlu0 %690
  %v694 = vsel %vm20, %v445, %v610
  %v695 = vsel %vm20, %v453, %v612
  %v696 = vsel %vm212, %v694, %v617
  %v697 = vsel %vm212, %v695, %v619
  %v698 = vsel %vm215, %v696, %v624
  %v699 = vsel %vm215, %v697, %v626
  %v700 = vsel %vm218, %v698, %v631
  %v701 = vsel %vm218, %v699, %v633
  %v702 = vsel %vm221, %v700, %v638
  %v703 = vsel %vm221, %v701, %v640
  %v704 = vsel %vm224, %v702, %v645
  %v705 = vsel %vm224, %v703, %v647
  %v706 = vsel %vm227, %v704, %v652
  %v707 = vsel %vm227, %v705, %v654
  %v708 = vsel %vm230, %v706, %v660
  %v709 = vsel %vm230, %v707, %v662
  %v710 = vsel %vm233, %v708, %v667
  %v711 = vsel %vm233, %v709, %v669
  %v712 = vsel %vm236, %v710, %v674
  %v713 = vsel %vm236, %v711, %v676
  %v714 = vsel %vm239, %v712, %v681
  %v715 = vsel %vm239, %v713, %v683
  %v716 = vsel %vm242, %v714, %v689
  %v717 = vsel %vm242, %v715, %v691
  %v718 = vsel %vm245, %v716, 0.0
  %v719 = vsel %vm245, %v717, 0.0
  %722 = vrot.lane.b32.xlu0 %v718, 64
  %v723 = vpop.permute.xlu0 %722
  %724 = vrot.lane.b32.xlu0 %v719, 64
  %v725 = vpop.permute.xlu0 %724
  %v728 = vsel %vm398, %v606, %v723
  %v729 = vsel %vm398, %v607, %v725
  %v730 = vpack.c.bf16 %v729, %v728
  %v732 = vunpack.c.l.b16 %v730
  %v733 = vunpack.c.h.b16 %v730
  %v734 = vpack.c.b16 %v732, %v732
  %v735 = vpack.c.b16 %v733, %v733
  %738 = vst [vmem:[#allocation4 + $0x4] sm:$0xf] %v734
  %739 = vst [vmem:[#allocation4 + $0xc] sm:$0xf] %v735
  %v740 = vld [vmem:[%s41] sm:$0xff]
  %v741 = vld [vmem:[%s41 + $0x8] sm:$0xff]
  %v742 = vld [vmem:[%s41 + $0x1] sm:$0xff]
  %v743 = vld [vmem:[%s41 + $0x9] sm:$0xff]
  %v744 = vld [vmem:[%s41 + $0x2] sm:$0xff]
  %v745 = vld [vmem:[%s41 + $0xa] sm:$0xff]
  %v746 = vld [vmem:[%s41 + $0x3] sm:$0xff]
  %v747 = vld [vmem:[%s41 + $0xb] sm:$0xff]
  %v748 = vld [vmem:[%s41 + $0x4] sm:$0xff]
  %v749 = vld [vmem:[%s41 + $0xc] sm:$0xff]
  %v750 = vld [vmem:[%s41 + $0x5] sm:$0xff]
  %v751 = vld [vmem:[%s41 + $0xd] sm:$0xff]
  %v752 = vld [vmem:[%s41 + $0x6] sm:$0xff]
  %v753 = vld [vmem:[%s41 + $0xe] sm:$0xff]
  %v754 = vld [vmem:[%s41 + $0x7] sm:$0xff]
  %v755 = vld [vmem:[%s41 + $0xf] sm:$0xff]
  %v756 = vld [vmem:[%s41 + $0x10] sm:$0xff]
  %v757 = vld [vmem:[%s41 + $0x11] sm:$0xff]
  %v758 = vld [vmem:[%s41 + $0x12] sm:$0xff]
  %v759 = vld [vmem:[%s41 + $0x13] sm:$0xff]
  %v760 = vld [vmem:[%s41 + $0x14] sm:$0xff]
  %v761 = vld [vmem:[%s41 + $0x15] sm:$0xff]
  %v762 = vld [vmem:[%s41 + $0x16] sm:$0xff]
  %v763 = vld [vmem:[%s41 + $0x17] sm:$0xff]
  %v764 = vld [vmem:[%s41 + $0x18] sm:$0xff]
  %v765 = vld [vmem:[%s41 + $0x19] sm:$0xff]
  %v766 = vld [vmem:[%s41 + $0x1a] sm:$0xff]
  %v767 = vld [vmem:[%s41 + $0x1b] sm:$0xff]
  %v768 = vld [vmem:[%s41 + $0x1c] sm:$0xff]
  %v769 = vld [vmem:[%s41 + $0x1d] sm:$0xff]
  %v770 = vld [vmem:[%s41 + $0x1e] sm:$0xff]
  %v771 = vld [vmem:[%s41 + $0x1f] sm:$0xff]
  %v772 = vld [vmem:[%s41 + $0x20] sm:$0xff]
  %v773 = vld [vmem:[%s41 + $0x21] sm:$0xff]
  %v774 = vld [vmem:[%s41 + $0x22] sm:$0xff]
  %v775 = vld [vmem:[%s41 + $0x23] sm:$0xff]
  %v776 = vld [vmem:[%s41 + $0x24] sm:$0xff]
  %v777 = vld [vmem:[%s41 + $0x25] sm:$0xff]
  %v778 = vld [vmem:[%s41 + $0x26] sm:$0xff]
  %v779 = vld [vmem:[%s41 + $0x27] sm:$0xff]
  %782 = vrot.lane.b32.xlu0 %v742, 4
  %v783 = vpop.permute.xlu0 %782
  %784 = vrot.lane.b32.xlu0 %v743, 4
  %v785 = vpop.permute.xlu0 %784
  %790 = vrot.lane.b32.xlu0 %v744, 8
  %v791 = vpop.permute.xlu0 %790
  %792 = vrot.lane.b32.xlu0 %v745, 8
  %v793 = vpop.permute.xlu0 %792
  %798 = vrot.lane.b32.xlu0 %v746, 12
  %v799 = vpop.permute.xlu0 %798
  %800 = vrot.lane.b32.xlu0 %v747, 12
  %v801 = vpop.permute.xlu0 %800
  %806 = vrot.lane.b32.xlu0 %v748, 16
  %v807 = vpop.permute.xlu0 %806
  %808 = vrot.lane.b32.xlu0 %v749, 16
  %v809 = vpop.permute.xlu0 %808
  %814 = vrot.lane.b32.xlu0 %v750, 20
  %v815 = vpop.permute.xlu0 %814
  %816 = vrot.lane.b32.xlu0 %v751, 20
  %v817 = vpop.permute.xlu0 %816
  %822 = vrot.lane.b32.xlu0 %v752, 24
  %v823 = vpop.permute.xlu0 %822
  %824 = vrot.lane.b32.xlu0 %v753, 24
  %v825 = vpop.permute.xlu0 %824
  %830 = vrot.lane.b32.xlu0 %v754, 28
  %v831 = vpop.permute.xlu0 %830
  %832 = vrot.lane.b32.xlu0 %v755, 28
  %v833 = vpop.permute.xlu0 %832
  %838 = vrot.lane.b32.xlu0 %v741, 32
  %v839 = vpop.permute.xlu0 %838
  %840 = vrot.lane.b32.xlu0 %v756, 32
  %v841 = vpop.permute.xlu0 %840
  %845 = vrot.lane.b32.xlu0 %v743, 36
  %v846 = vpop.permute.xlu0 %845
  %847 = vrot.lane.b32.xlu0 %v757, 36
  %v848 = vpop.permute.xlu0 %847
  %852 = vrot.lane.b32.xlu0 %v745, 40
  %v853 = vpop.permute.xlu0 %852
  %854 = vrot.lane.b32.xlu0 %v758, 40
  %v855 = vpop.permute.xlu0 %854
  %859 = vrot.lane.b32.xlu0 %v747, 44
  %v860 = vpop.permute.xlu0 %859
  %861 = vrot.lane.b32.xlu0 %v759, 44
  %v862 = vpop.permute.xlu0 %861
  %866 = vrot.lane.b32.xlu0 %v749, 48
  %v867 = vpop.permute.xlu0 %866
  %868 = vrot.lane.b32.xlu0 %v760, 48
  %v869 = vpop.permute.xlu0 %868
  %873 = vrot.lane.b32.xlu0 %v751, 52
  %v874 = vpop.permute.xlu0 %873
  %875 = vrot.lane.b32.xlu0 %v761, 52
  %v876 = vpop.permute.xlu0 %875
  %880 = vrot.lane.b32.xlu0 %v753, 56
  %v881 = vpop.permute.xlu0 %880
  %882 = vrot.lane.b32.xlu0 %v762, 56
  %v883 = vpop.permute.xlu0 %882
  %887 = vrot.lane.b32.xlu0 %v755, 60
  %v888 = vpop.permute.xlu0 %887
  %889 = vrot.lane.b32.xlu0 %v763, 60
  %v890 = vpop.permute.xlu0 %889
  %v893 = vsel %vm20, %v740, %v783
  %v894 = vsel %vm20, %v741, %v785
  %v895 = vsel %vm212, %v893, %v791
  %v896 = vsel %vm212, %v894, %v793
  %v897 = vsel %vm215, %v895, %v799
  %v898 = vsel %vm215, %v896, %v801
  %v899 = vsel %vm218, %v897, %v807
  %v900 = vsel %vm218, %v898, %v809
  %v901 = vsel %vm221, %v899, %v815
  %v902 = vsel %vm221, %v900, %v817
  %v903 = vsel %vm224, %v901, %v823
  %v904 = vsel %vm224, %v902, %v825
  %v905 = vsel %vm227, %v903, %v831
  %v906 = vsel %vm227, %v904, %v833
  %v907 = vsel %vm230, %v905, %v839
  %v908 = vsel %vm230, %v906, %v841
  %v909 = vsel %vm233, %v907, %v846
  %v910 = vsel %vm233, %v908, %v848
  %v911 = vsel %vm236, %v909, %v853
  %v912 = vsel %vm236, %v910, %v855
  %v913 = vsel %vm239, %v911, %v860
  %v914 = vsel %vm239, %v912, %v862
  %v915 = vsel %vm242, %v913, %v867
  %v916 = vsel %vm242, %v914, %v869
  %v917 = vsel %vm245, %v915, %v874
  %v918 = vsel %vm245, %v916, %v876
  %v919 = vsel %vm248, %v917, %v881
  %v920 = vsel %vm248, %v918, %v883
  %v921 = vsel %vm251, %v919, %v888
  %v922 = vsel %vm251, %v920, %v890
  %924 = vrot.lane.b32.xlu0 %v757, 4
  %v925 = vpop.permute.xlu0 %924
  %926 = vrot.lane.b32.xlu0 %v765, 4
  %v927 = vpop.permute.xlu0 %926
  %931 = vrot.lane.b32.xlu0 %v758, 8
  %v932 = vpop.permute.xlu0 %931
  %933 = vrot.lane.b32.xlu0 %v766, 8
  %v934 = vpop.permute.xlu0 %933
  %938 = vrot.lane.b32.xlu0 %v759, 12
  %v939 = vpop.permute.xlu0 %938
  %940 = vrot.lane.b32.xlu0 %v767, 12
  %v941 = vpop.permute.xlu0 %940
  %945 = vrot.lane.b32.xlu0 %v760, 16
  %v946 = vpop.permute.xlu0 %945
  %947 = vrot.lane.b32.xlu0 %v768, 16
  %v948 = vpop.permute.xlu0 %947
  %952 = vrot.lane.b32.xlu0 %v761, 20
  %v953 = vpop.permute.xlu0 %952
  %954 = vrot.lane.b32.xlu0 %v769, 20
  %v955 = vpop.permute.xlu0 %954
  %959 = vrot.lane.b32.xlu0 %v762, 24
  %v960 = vpop.permute.xlu0 %959
  %961 = vrot.lane.b32.xlu0 %v770, 24
  %v962 = vpop.permute.xlu0 %961
  %966 = vrot.lane.b32.xlu0 %v763, 28
  %v967 = vpop.permute.xlu0 %966
  %968 = vrot.lane.b32.xlu0 %v771, 28
  %v969 = vpop.permute.xlu0 %968
  %974 = vrot.lane.b32.xlu0 %v764, 32
  %v975 = vpop.permute.xlu0 %974
  %976 = vrot.lane.b32.xlu0 %v772, 32
  %v977 = vpop.permute.xlu0 %976
  %981 = vrot.lane.b32.xlu0 %v765, 36
  %v982 = vpop.permute.xlu0 %981
  %983 = vrot.lane.b32.xlu0 %v773, 36
  %v984 = vpop.permute.xlu0 %983
  %988 = vrot.lane.b32.xlu0 %v766, 40
  %v989 = vpop.permute.xlu0 %988
  %990 = vrot.lane.b32.xlu0 %v774, 40
  %v991 = vpop.permute.xlu0 %990
  %995 = vrot.lane.b32.xlu0 %v767, 44
  %v996 = vpop.permute.xlu0 %995
  %997 = vrot.lane.b32.xlu0 %v775, 44
  %v998 = vpop.permute.xlu0 %997
  %1002 = vrot.lane.b32.xlu0 %v768, 48
  %v1003 = vpop.permute.xlu0 %1002
  %1004 = vrot.lane.b32.xlu0 %v776, 48
  %v1005 = vpop.permute.xlu0 %1004
  %1009 = vrot.lane.b32.xlu0 %v769, 52
  %v1010 = vpop.permute.xlu0 %1009
  %1011 = vrot.lane.b32.xlu0 %v777, 52
  %v1012 = vpop.permute.xlu0 %1011
  %1016 = vrot.lane.b32.xlu0 %v770, 56
  %v1017 = vpop.permute.xlu0 %1016
  %1018 = vrot.lane.b32.xlu0 %v778, 56
  %v1019 = vpop.permute.xlu0 %1018
  %1023 = vrot.lane.b32.xlu0 %v771, 60
  %v1024 = vpop.permute.xlu0 %1023
  %1025 = vrot.lane.b32.xlu0 %v779, 60
  %v1026 = vpop.permute.xlu0 %1025
  %v1029 = vsel %vm20, %v756, %v925
  %v1030 = vsel %vm20, %v764, %v927
  %v1031 = vsel %vm212, %v1029, %v932
  %v1032 = vsel %vm212, %v1030, %v934
  %v1033 = vsel %vm215, %v1031, %v939
  %v1034 = vsel %vm215, %v1032, %v941
  %v1035 = vsel %vm218, %v1033, %v946
  %v1036 = vsel %vm218, %v1034, %v948
  %v1037 = vsel %vm221, %v1035, %v953
  %v1038 = vsel %vm221, %v1036, %v955
  %v1039 = vsel %vm224, %v1037, %v960
  %v1040 = vsel %vm224, %v1038, %v962
  %v1041 = vsel %vm227, %v1039, %v967
  %v1042 = vsel %vm227, %v1040, %v969
  %v1043 = vsel %vm230, %v1041, %v975
  %v1044 = vsel %vm230, %v1042, %v977
  %v1045 = vsel %vm233, %v1043, %v982
  %v1046 = vsel %vm233, %v1044, %v984
  %v1047 = vsel %vm236, %v1045, %v989
  %v1048 = vsel %vm236, %v1046, %v991
  %v1049 = vsel %vm239, %v1047, %v996
  %v1050 = vsel %vm239, %v1048, %v998
  %v1051 = vsel %vm242, %v1049, %v1003
  %v1052 = vsel %vm242, %v1050, %v1005
  %v1053 = vsel %vm245, %v1051, %v1010
  %v1054 = vsel %vm245, %v1052, %v1012
  %v1055 = vsel %vm248, %v1053, %v1017
  %v1056 = vsel %vm248, %v1054, %v1019
  %v1057 = vsel %vm251, %v1055, %v1024
  %v1058 = vsel %vm251, %v1056, %v1026
  %1061 = vrot.lane.b32.xlu0 %v1057, 64
  %v1062 = vpop.permute.xlu0 %1061
  %1063 = vrot.lane.b32.xlu0 %v1058, 64
  %v1064 = vpop.permute.xlu0 %1063
  %v1067 = vsel %vm398, %v921, %v1062
  %v1068 = vsel %vm398, %v922, %v1064
  %v1069 = vpack.c.bf16 %v1068, %v1067
  %v1071 = vunpack.c.l.b16 %v1069
  %v1072 = vunpack.c.h.b16 %v1069
  %v1073 = vpack.c.b16 %v1071, %v1071
  %v1074 = vpack.c.b16 %v1072, %v1072
  %1077 = vst [vmem:[#allocation4 + $0x10] sm:$0xf] %v1073
  %1078 = vst [vmem:[#allocation4 + $0x18] sm:$0xf] %v1074
  %v1079 = vld [vmem:[%s52] sm:$0xff]
  %v1080 = vld [vmem:[%s52 + $0x8] sm:$0xff]
  %v1081 = vld [vmem:[%s52 + $0x1] sm:$0xff]
  %v1082 = vld [vmem:[%s52 + $0x9] sm:$0xff]
  %v1083 = vmax.f32 %v1079, %v1081
  %v1084 = vmax.f32 %v1080, %v1082
  %v1085 = vld [vmem:[%s52 + $0x2] sm:$0xff]
  %v1086 = vld [vmem:[%s52 + $0xa] sm:$0xff]
  %v1087 = vmax.f32 %v1083, %v1085
  %v1088 = vmax.f32 %v1084, %v1086
  %v1089 = vld [vmem:[%s52 + $0x3] sm:$0xff]
  %v1090 = vld [vmem:[%s52 + $0xb] sm:$0xff]
  %v1091 = vmax.f32 %v1087, %v1089
  %v1092 = vmax.f32 %v1088, %v1090
  %v1093 = vld [vmem:[%s52 + $0x4] sm:$0xff]
  %v1094 = vld [vmem:[%s52 + $0xc] sm:$0xff]
  %v1095 = vmax.f32 %v1091, %v1093
  %v1096 = vmax.f32 %v1092, %v1094
  %v1097 = vld [vmem:[%s41 + $0x20] sm:$0xff]
  %v1098 = vld [vmem:[%s41 + $0x28] sm:$0xff]
  %v1099 = vld [vmem:[%s41 + $0x21] sm:$0xff]
  %v1100 = vld [vmem:[%s41 + $0x29] sm:$0xff]
  %v1101 = vld [vmem:[%s41 + $0x22] sm:$0xff]
  %v1102 = vld [vmem:[%s41 + $0x2a] sm:$0xff]
  %v1103 = vld [vmem:[%s41 + $0x23] sm:$0xff]
  %v1104 = vld [vmem:[%s41 + $0x2b] sm:$0xff]
  %v1105 = vld [vmem:[%s41 + $0x24] sm:$0xff]
  %v1106 = vld [vmem:[%s41 + $0x2c] sm:$0xff]
  %v1107 = vld [vmem:[%s41 + $0x25] sm:$0xff]
  %v1108 = vld [vmem:[%s41 + $0x2d] sm:$0xff]
  %v1109 = vld [vmem:[%s41 + $0x26] sm:$0xff]
  %v1110 = vld [vmem:[%s41 + $0x2e] sm:$0xff]
  %v1111 = vld [vmem:[%s41 + $0x27] sm:$0xff]
  %v1112 = vld [vmem:[%s41 + $0x2f] sm:$0xff]
  %v1113 = vld [vmem:[%s41 + $0x30] sm:$0xff]
  %v1114 = vld [vmem:[%s41 + $0x31] sm:$0xff]
  %v1115 = vld [vmem:[%s41 + $0x32] sm:$0xff]
  %v1116 = vld [vmem:[%s41 + $0x33] sm:$0xff]
  %v1117 = vld [vmem:[%s41 + $0x34] sm:$0xff]
  %v1118 = vld [vmem:[%s41 + $0x35] sm:$0xff]
  %v1119 = vld [vmem:[%s41 + $0x36] sm:$0xff]
  %v1120 = vld [vmem:[%s41 + $0x37] sm:$0xff]
  %v1121 = vld [vmem:[%s41 + $0x38] sm:$0xff]
  %v1122 = vld [vmem:[%s41 + $0x39] sm:$0xff]
  %v1123 = vld [vmem:[%s41 + $0x3a] sm:$0xff]
  %v1124 = vld [vmem:[%s41 + $0x3b] sm:$0xff]
  %v1125 = vld [vmem:[%s41 + $0x3c] sm:$0xff]
  %v1126 = vld [vmem:[%s41 + $0x3d] sm:$0xff]
  %v1127 = vld [vmem:[%s41 + $0x3e] sm:$0xff]
  %v1128 = vld [vmem:[%s41 + $0x3f] sm:$0xff]
  %v1129 = vld [vmem:[%s41 + $0x40] sm:$0xff]
  %v1130 = vld [vmem:[%s41 + $0x41] sm:$0xff]
  %v1131 = vld [vmem:[%s41 + $0x42] sm:$0xff]
  %v1132 = vld [vmem:[%s41 + $0x43] sm:$0xff]
  %1135 = vrot.lane.b32.xlu0 %v1099, 4
  %v1136 = vpop.permute.xlu0 %1135
  %1137 = vrot.lane.b32.xlu0 %v1100, 4
  %v1138 = vpop.permute.xlu0 %1137
  %1143 = vrot.lane.b32.xlu0 %v1101, 8
  %v1144 = vpop.permute.xlu0 %1143
  %1145 = vrot.lane.b32.xlu0 %v1102, 8
  %v1146 = vpop.permute.xlu0 %1145
  %1151 = vrot.lane.b32.xlu0 %v1103, 12
  %v1152 = vpop.permute.xlu0 %1151
  %1153 = vrot.lane.b32.xlu0 %v1104, 12
  %v1154 = vpop.permute.xlu0 %1153
  %1159 = vrot.lane.b32.xlu0 %v1105, 16
  %v1160 = vpop.permute.xlu0 %1159
  %1161 = vrot.lane.b32.xlu0 %v1106, 16
  %v1162 = vpop.permute.xlu0 %1161
  %1167 = vrot.lane.b32.xlu0 %v1107, 20
  %v1168 = vpop.permute.xlu0 %1167
  %1169 = vrot.lane.b32.xlu0 %v1108, 20
  %v1170 = vpop.permute.xlu0 %1169
  %1175 = vrot.lane.b32.xlu0 %v1109, 24
  %v1176 = vpop.permute.xlu0 %1175
  %1177 = vrot.lane.b32.xlu0 %v1110, 24
  %v1178 = vpop.permute.xlu0 %1177
  %1183 = vrot.lane.b32.xlu0 %v1111, 28
  %v1184 = vpop.permute.xlu0 %1183
  %1185 = vrot.lane.b32.xlu0 %v1112, 28
  %v1186 = vpop.permute.xlu0 %1185
  %1191 = vrot.lane.b32.xlu0 %v1098, 32
  %v1192 = vpop.permute.xlu0 %1191
  %1193 = vrot.lane.b32.xlu0 %v1113, 32
  %v1194 = vpop.permute.xlu0 %1193
  %1198 = vrot.lane.b32.xlu0 %v1100, 36
  %v1199 = vpop.permute.xlu0 %1198
  %1200 = vrot.lane.b32.xlu0 %v1114, 36
  %v1201 = vpop.permute.xlu0 %1200
  %1205 = vrot.lane.b32.xlu0 %v1102, 40
  %v1206 = vpop.permute.xlu0 %1205
  %1207 = vrot.lane.b32.xlu0 %v1115, 40
  %v1208 = vpop.permute.xlu0 %1207
  %1212 = vrot.lane.b32.xlu0 %v1104, 44
  %v1213 = vpop.permute.xlu0 %1212
  %1214 = vrot.lane.b32.xlu0 %v1116, 44
  %v1215 = vpop.permute.xlu0 %1214
  %1219 = vrot.lane.b32.xlu0 %v1106, 48
  %v1220 = vpop.permute.xlu0 %1219
  %1221 = vrot.lane.b32.xlu0 %v1117, 48
  %v1222 = vpop.permute.xlu0 %1221
  %1226 = vrot.lane.b32.xlu0 %v1108, 52
  %v1227 = vpop.permute.xlu0 %1226
  %1228 = vrot.lane.b32.xlu0 %v1118, 52
  %v1229 = vpop.permute.xlu0 %1228
  %1233 = vrot.lane.b32.xlu0 %v1110, 56
  %v1234 = vpop.permute.xlu0 %1233
  %1235 = vrot.lane.b32.xlu0 %v1119, 56
  %v1236 = vpop.permute.xlu0 %1235
  %1240 = vrot.lane.b32.xlu0 %v1112, 60
  %v1241 = vpop.permute.xlu0 %1240
  %1242 = vrot.lane.b32.xlu0 %v1120, 60
  %v1243 = vpop.permute.xlu0 %1242
  %v1246 = vsel %vm20, %v1097, %v1136
  %v1247 = vsel %vm20, %v1098, %v1138
  %v1248 = vsel %vm212, %v1246, %v1144
  %v1249 = vsel %vm212, %v1247, %v1146
  %v1250 = vsel %vm215, %v1248, %v1152
  %v1251 = vsel %vm215, %v1249, %v1154
  %v1252 = vsel %vm218, %v1250, %v1160
  %v1253 = vsel %vm218, %v1251, %v1162
  %v1254 = vsel %vm221, %v1252, %v1168
  %v1255 = vsel %vm221, %v1253, %v1170
  %v1256 = vsel %vm224, %v1254, %v1176
  %v1257 = vsel %vm224, %v1255, %v1178
  %v1258 = vsel %vm227, %v1256, %v1184
  %v1259 = vsel %vm227, %v1257, %v1186
  %v1260 = vsel %vm230, %v1258, %v1192
  %v1261 = vsel %vm230, %v1259, %v1194
  %v1262 = vsel %vm233, %v1260, %v1199
  %v1263 = vsel %vm233, %v1261, %v1201
  %v1264 = vsel %vm236, %v1262, %v1206
  %v1265 = vsel %vm236, %v1263, %v1208
  %v1266 = vsel %vm239, %v1264, %v1213
  %v1267 = vsel %vm239, %v1265, %v1215
  %v1268 = vsel %vm242, %v1266, %v1220
  %v1269 = vsel %vm242, %v1267, %v1222
  %v1270 = vsel %vm245, %v1268, %v1227
  %v1271 = vsel %vm245, %v1269, %v1229
  %v1272 = vsel %vm248, %v1270, %v1234
  %v1273 = vsel %vm248, %v1271, %v1236
  %v1274 = vsel %vm251, %v1272, %v1241
  %v1275 = vsel %vm251, %v1273, %v1243
  %1277 = vrot.lane.b32.xlu0 %v1114, 4
  %v1278 = vpop.permute.xlu0 %1277
  %1279 = vrot.lane.b32.xlu0 %v1122, 4
  %v1280 = vpop.permute.xlu0 %1279
  %1284 = vrot.lane.b32.xlu0 %v1115, 8
  %v1285 = vpop.permute.xlu0 %1284
  %1286 = vrot.lane.b32.xlu0 %v1123, 8
  %v1287 = vpop.permute.xlu0 %1286
  %1291 = vrot.lane.b32.xlu0 %v1116, 12
  %v1292 = vpop.permute.xlu0 %1291
  %1293 = vrot.lane.b32.xlu0 %v1124, 12
  %v1294 = vpop.permute.xlu0 %1293
  %1298 = vrot.lane.b32.xlu0 %v1117, 16
  %v1299 = vpop.permute.xlu0 %1298
  %1300 = vrot.lane.b32.xlu0 %v1125, 16
  %v1301 = vpop.permute.xlu0 %1300
  %1305 = vrot.lane.b32.xlu0 %v1118, 20
  %v1306 = vpop.permute.xlu0 %1305
  %1307 = vrot.lane.b32.xlu0 %v1126, 20
  %v1308 = vpop.permute.xlu0 %1307
  %1312 = vrot.lane.b32.xlu0 %v1119, 24
  %v1313 = vpop.permute.xlu0 %1312
  %1314 = vrot.lane.b32.xlu0 %v1127, 24
  %v1315 = vpop.permute.xlu0 %1314
  %1319 = vrot.lane.b32.xlu0 %v1120, 28
  %v1320 = vpop.permute.xlu0 %1319
  %1321 = vrot.lane.b32.xlu0 %v1128, 28
  %v1322 = vpop.permute.xlu0 %1321
  %1327 = vrot.lane.b32.xlu0 %v1121, 32
  %v1328 = vpop.permute.xlu0 %1327
  %1329 = vrot.lane.b32.xlu0 %v1129, 32
  %v1330 = vpop.permute.xlu0 %1329
  %1334 = vrot.lane.b32.xlu0 %v1122, 36
  %v1335 = vpop.permute.xlu0 %1334
  %1336 = vrot.lane.b32.xlu0 %v1130, 36
  %v1337 = vpop.permute.xlu0 %1336
  %1341 = vrot.lane.b32.xlu0 %v1123, 40
  %v1342 = vpop.permute.xlu0 %1341
  %1343 = vrot.lane.b32.xlu0 %v1131, 40
  %v1344 = vpop.permute.xlu0 %1343
  %1348 = vrot.lane.b32.xlu0 %v1124, 44
  %v1349 = vpop.permute.xlu0 %1348
  %1350 = vrot.lane.b32.xlu0 %v1132, 44
  %v1351 = vpop.permute.xlu0 %1350
  %1356 = vrot.lane.b32.xlu0 %v1095, 48
  %v1357 = vpop.permute.xlu0 %1356
  %1358 = vrot.lane.b32.xlu0 %v1096, 48
  %v1359 = vpop.permute.xlu0 %1358
  %v1362 = vsel %vm20, %v1113, %v1278
  %v1363 = vsel %vm20, %v1121, %v1280
  %v1364 = vsel %vm212, %v1362, %v1285
  %v1365 = vsel %vm212, %v1363, %v1287
  %v1366 = vsel %vm215, %v1364, %v1292
  %v1367 = vsel %vm215, %v1365, %v1294
  %v1368 = vsel %vm218, %v1366, %v1299
  %v1369 = vsel %vm218, %v1367, %v1301
  %v1370 = vsel %vm221, %v1368, %v1306
  %v1371 = vsel %vm221, %v1369, %v1308
  %v1372 = vsel %vm224, %v1370, %v1313
  %v1373 = vsel %vm224, %v1371, %v1315
  %v1374 = vsel %vm227, %v1372, %v1320
  %v1375 = vsel %vm227, %v1373, %v1322
  %v1376 = vsel %vm230, %v1374, %v1328
  %v1377 = vsel %vm230, %v1375, %v1330
  %v1378 = vsel %vm233, %v1376, %v1335
  %v1379 = vsel %vm233, %v1377, %v1337
  %v1380 = vsel %vm236, %v1378, %v1342
  %v1381 = vsel %vm236, %v1379, %v1344
  %v1382 = vsel %vm239, %v1380, %v1349
  %v1383 = vsel %vm239, %v1381, %v1351
  %v1384 = vsel %vm242, %v1382, %v1357
  %v1385 = vsel %vm242, %v1383, %v1359
  %v1386 = vsel %vm245, %v1384, 0.0
  %v1387 = vsel %vm245, %v1385, 0.0
  %1390 = vrot.lane.b32.xlu0 %v1386, 64
  %v1391 = vpop.permute.xlu0 %1390
  %1392 = vrot.lane.b32.xlu0 %v1387, 64
  %v1393 = vpop.permute.xlu0 %1392
  %v1396 = vsel %vm398, %v1274, %v1391
  %v1397 = vsel %vm398, %v1275, %v1393
  %v1398 = vpack.c.bf16 %v1397, %v1396
  %v1400 = vunpack.c.l.b16 %v1398
  %v1401 = vunpack.c.h.b16 %v1398
  %v1402 = vpack.c.b16 %v1400, %v1400
  %v1403 = vpack.c.b16 %v1401, %v1401
  %1406 = vst [vmem:[#allocation4 + $0x14] sm:$0xf] %v1402
  %1407 = vst [vmem:[#allocation4 + $0x1c] sm:$0xf] %v1403
  %v1408 = vld [vmem:[#allocation4] sm:$0xff]
  %v1409 = vld [vmem:[#allocation4 + $0x8] sm:$0xff]
  %v1410 = vld [vmem:[#allocation4 + $0x10] sm:$0xff]
  %v1411 = vld [vmem:[#allocation4 + $0x18] sm:$0xff]
  %v1412 = vld [vmem:[%s1] sm:$0xf]
  %v1413 = vld [vmem:[%s1 + $0x4] sm:$0xf]
  %v1414 = vld [vmem:[%s1 + $0x8] sm:$0xf]
  %v1415 = vld [vmem:[%s1 + $0xc] sm:$0xf]
  %v1416 = vld [vmem:[%s1 + $0x10] sm:$0xf]
  %v1417 = vld [vmem:[%s1 + $0x14] sm:$0xf]
  %v1418 = vld [vmem:[%s1 + $0x18] sm:$0xf]
  %v1419 = vld [vmem:[%s1 + $0x1c] sm:$0xf]
  %v1420 = vld [vmem:[%s1 + $0x20] sm:$0xf]
  %v1421 = vld [vmem:[%s1 + $0x24] sm:$0xf]
  %v1422 = vld [vmem:[%s1 + $0x28] sm:$0xf]
  %v1423 = vld [vmem:[%s1 + $0x2c] sm:$0xf]
  %v1424 = vld [vmem:[%s1 + $0x30] sm:$0xf]
  %v1425 = vld [vmem:[%s1 + $0x34] sm:$0xf]
  %v1426 = vld [vmem:[%s1 + $0x38] sm:$0xf]
  %v1427 = vld [vmem:[%s1 + $0x3c] sm:$0xf]
  %v1428 = vld [vmem:[%s1 + $0x40] sm:$0xf]
  %v1429 = vld [vmem:[%s1 + $0x44] sm:$0xf]
  %v1430 = vld [vmem:[%s1 + $0x48] sm:$0xf]
  %v1431 = vld [vmem:[%s1 + $0x4c] sm:$0xf]
  %v1432 = vld [vmem:[%s1 + $0x50] sm:$0xf]
  %v1433 = vld [vmem:[%s1 + $0x54] sm:$0xf]
  %v1434 = vld [vmem:[%s1 + $0x58] sm:$0xf]
  %v1435 = vld [vmem:[%s1 + $0x5c] sm:$0xf]
  %v1436 = vld [vmem:[%s1 + $0x60] sm:$0xf]
  %v1437 = vld [vmem:[%s1 + $0x64] sm:$0xf]
  %v1438 = vld [vmem:[%s1 + $0x68] sm:$0xf]
  %v1439 = vld [vmem:[%s1 + $0x6c] sm:$0xf]
  %v1440 = vld [vmem:[%s1 + $0x70] sm:$0xf]
  %v1441 = vld [vmem:[%s1 + $0x74] sm:$0xf]
  %v1442 = vld [vmem:[%s1 + $0x78] sm:$0xf]
  %v1443 = vld [vmem:[%s1 + $0x7c] sm:$0xf]
  %v1444 = vld [vmem:[%s2] sm:$0xff]
  %v1445 = vld [vmem:[%s2 + $0x8] sm:$0xff]
  %v1446 = vld [vmem:[%s2 + $0x10] sm:$0xff]
  %v1447 = vld [vmem:[%s2 + $0x18] sm:$0xff]
  %v1452 = vunpack.c.l.b16 %v1408
  %v1453 = vunpack.c.h.b16 %v1408
  %v1454 = vunpack.c.l.b16 %v1409
  %v1455 = vunpack.c.h.b16 %v1409
  %v1456 = vunpack.c.l.b16 %v1410
  %v1457 = vunpack.c.h.b16 %v1410
  %v1458 = vunpack.c.l.b16 %v1411
  %v1459 = vunpack.c.h.b16 %v1411
  %v1460 = vpack.c.b16 %v1454, %v1452
  %v1461 = vpack.c.b16 %v1455, %v1453
  %v1462 = vpack.c.b16 %v1458, %v1456
  %v1463 = vpack.c.b16 %v1459, %v1457
  %v1500 = vunpack.c.l.b16 %v1412
  %v1501 = vunpack.c.l.b16 %v1413
  %v1502 = vunpack.c.l.b16 %v1414
  %v1503 = vunpack.c.l.b16 %v1415
  %v1504 = vunpack.c.l.b16 %v1416
  %v1505 = vunpack.c.l.b16 %v1417
  %v1506 = vunpack.c.l.b16 %v1418
  %v1507 = vunpack.c.l.b16 %v1419
  %v1508 = vunpack.c.l.b16 %v1420
  %v1509 = vunpack.c.l.b16 %v1421
  %v1510 = vunpack.c.l.b16 %v1422
  %v1511 = vunpack.c.l.b16 %v1423
  %v1512 = vunpack.c.l.b16 %v1424
  %v1513 = vunpack.c.l.b16 %v1425
  %v1514 = vunpack.c.l.b16 %v1426
  %v1515 = vunpack.c.l.b16 %v1427
  %v1516 = vunpack.c.l.b16 %v1428
  %v1517 = vunpack.c.l.b16 %v1429
  %v1518 = vunpack.c.l.b16 %v1430
  %v1519 = vunpack.c.l.b16 %v1431
  %v1520 = vunpack.c.l.b16 %v1432
  %v1521 = vunpack.c.l.b16 %v1433
  %v1522 = vunpack.c.l.b16 %v1434
  %v1523 = vunpack.c.l.b16 %v1435
  %v1524 = vunpack.c.l.b16 %v1436
  %v1525 = vunpack.c.l.b16 %v1437
  %v1526 = vunpack.c.l.b16 %v1438
  %v1527 = vunpack.c.l.b16 %v1439
  %v1528 = vunpack.c.l.b16 %v1440
  %v1529 = vunpack.c.l.b16 %v1441
  %v1530 = vunpack.c.l.b16 %v1442
  %v1531 = vunpack.c.l.b16 %v1443
  %v1532 = vpack.c.b16 %v1501, %v1500
  %v1533 = vpack.c.b16 %v1503, %v1502
  %v1534 = vpack.c.b16 %v1505, %v1504
  %v1535 = vpack.c.b16 %v1507, %v1506
  %v1536 = vpack.c.b16 %v1509, %v1508
  %v1537 = vpack.c.b16 %v1511, %v1510
  %v1538 = vpack.c.b16 %v1513, %v1512
  %v1539 = vpack.c.b16 %v1515, %v1514
  %v1540 = vpack.c.b16 %v1517, %v1516
  %v1541 = vpack.c.b16 %v1519, %v1518
  %v1542 = vpack.c.b16 %v1521, %v1520
  %v1543 = vpack.c.b16 %v1523, %v1522
  %v1544 = vpack.c.b16 %v1525, %v1524
  %v1545 = vpack.c.b16 %v1527, %v1526
  %v1546 = vpack.c.b16 %v1529, %v1528
  %v1547 = vpack.c.b16 %v1531, %v1530
  %1564 = vmatprep.subr.bf16.mxu0 0
  %1565 = vmatpush1.bf16.msra.mxu0 %v1539
  %1566 = vmatprep.subr.bf16.mxu0 0
  %1567 = vmatpush1.bf16.msra.mxu0 %v1538
  %1568 = vmatprep.subr.bf16.mxu0 0
  %1569 = vmatpush1.bf16.msra.mxu0 %v1537
  %1570 = vmatprep.subr.bf16.mxu0 0
  %1571 = vmatpush1.bf16.msra.mxu0 %v1536
  %1572 = vmatprep.subr.bf16.mxu0 0
  %1573 = vmatpush1.bf16.msra.mxu0 %v1535
  %1574 = vmatprep.subr.bf16.mxu0 0
  %1575 = vmatpush1.bf16.msra.mxu0 %v1534
  %1576 = vmatprep.subr.bf16.mxu0 0
  %1577 = vmatpush1.bf16.msra.mxu0 %v1533
  %1578 = vmatprep.subr.bf16.mxu0 0
  %1579 = vmatpush1.bf16.msra.mxu0 %v1532
  %1580 = vmatprep.subr.bf16.mxu0 0
  %1581 = vmatpush2.bf16.msra.mxu0 %v1547
  %1582 = vmatprep.subr.bf16.mxu0 0
  %1583 = vmatpush2.bf16.msra.mxu0 %v1546
  %1584 = vmatprep.subr.bf16.mxu0 0
  %1585 = vmatpush2.bf16.msra.mxu0 %v1545
  %1586 = vmatprep.subr.bf16.mxu0 0
  %1587 = vmatpush2.bf16.msra.mxu0 %v1544
  %1588 = vmatprep.subr.bf16.mxu0 0
  %1589 = vmatpush2.bf16.msra.mxu0 %v1543
  %1590 = vmatprep.subr.bf16.mxu0 0
  %1591 = vmatpush2.bf16.msra.mxu0 %v1542
  %1592 = vmatprep.subr.bf16.mxu0 0
  %1593 = vmatpush2.bf16.msra.mxu0 %v1541
  %1594 = vmatprep.subr.bf16.mxu0 0
  %1595 = vmatpush2.bf16.msra.mxu0 %v1540
  %1596 = vmatprep.mubr.bf16.mxu0 %v1461
  %1597 = vmatmul.mubr.bf16.gmra.mxu0 %v1460
  %v1598 = vpop.f32.mrf.mxu0
  %v1599 = vadd.f32 %v1444, %v1598
  %v1600 = vpop.f32.mrf.mxu0
  %v1601 = vpop.f32.mrf.mxu0
  %v1602 = vadd.f32 %v1445, %v1601
  %v1603 = vpop.f32.mrf.mxu0
  %1604 = vmatprep.mubr.bf16.mxu0 %v1463
  %1605 = vmatmul.mubr.bf16.gmra.mxu0 %v1462
  %v1606 = vpop.f32.mrf.mxu0
  %v1607 = vadd.f32 %v1446, %v1606
  %v1608 = vpop.f32.mrf.mxu0
  %v1609 = vpop.f32.mrf.mxu0
  %v1610 = vadd.f32 %v1447, %v1609
  %v1611 = vpop.f32.mrf.mxu0
  %1612 = vdwg.mxu0
  %1613 = vst [vmem:[%s3] sm:$0xff] %v1599
  %1614 = vst [vmem:[%s3 + $0x8] sm:$0xff] %v1602
  %1615 = vst [vmem:[%s3 + $0x10] sm:$0xff] %v1607
  %1616 = vst [vmem:[%s3 + $0x18] sm:$0xff] %v1610
  %v1617 = vadd.f32 %v1599, %v1602
  %v1618 = vadd.f32 %v1617, %v1607
  %v1619 = vadd.f32 %v1618, %v1610
  %v1620 = vrot.slane %v1619, 4
  %v1621 = vadd.f32 %v1619, %v1620
  %v1622 = vrot.slane %v1621, 2
  %v1623 = vadd.f32 %v1621, %v1622
  %v1624 = vrot.slane %v1623, 1
  %v1625 = vadd.f32 %v1623, %v1624
  %1626 = vst [vmem:[%s4] sm:$0x1] %v1625
  %v1627 = vmul.f32 %v1599, %v1599
  %v1628 = vmul.f32 %v1602, %v1602
  %v1629 = vmul.f32 %v1607, %v1607
  %v1630 = vmul.f32 %v1610, %v1610
  %v1631 = vadd.f32 %v1627, %v1628
  %v1632 = vadd.f32 %v1631, %v1629
  %v1633 = vadd.f32 %v1632, %v1630
  %v1634 = vrot.slane %v1633, 4
  %v1635 = vadd.f32 %v1633, %v1634
  %v1636 = vrot.slane %v1635, 2
  %v1637 = vadd.f32 %v1635, %v1636
  %v1638 = vrot.slane %v1637, 1
  %v1639 = vadd.f32 %v1637, %v1638
  %1640 = vst [vmem:[%s5] sm:$0x1] %v1639
  // Predicated region
  $region14: #{inception_forward.2} parent=0 // pred_check
    _
  $region15: #{inception_forward.2} parent=0 // pred_check_branch
    %1642 = sbr.rel (0) target = $region17
  $region16: #{inception_forward.2} parent=0 // pred_region
    _
  $region17: #{inception_forward.2} parent=0 // pred_fallthru
    _
  // Predicated region
  $region18: #{inception_forward.2} parent=0 // pred_check
    _
  $region19: #{inception_forward.2} parent=0 // pred_check_branch
    %1644 = sbr.rel (0) target = $region21
  $region20: #{inception_forward.2} parent=0 // pred_region
    _
  $region21: #{inception_forward.2} parent=0 // pred_fallthru
    _
  // Predicated region
  $region22: #{inception_forward.2} parent=0 // pred_check
    _
  $region23: #{inception_forward.2} parent=0 // pred_check_branch
    %1646 = sbr.rel (0) target = $region25
  $region24: #{inception_forward.2} parent=0 // pred_region
    _
  $region25: #{inception_forward.2} parent=0 // pred_fallthru
    _
  // Predicated region
  $region26: #{inception_forward.2} parent=0 // pred_check
    _
  $region27: #{inception_forward.2} parent=0 // pred_check_branch
    %1648 = sbr.rel (0) target = $region29
  $region28: #{inception_forward.2} parent=0 // pred_region
    _
  $region29: #{inception_forward.2} parent=0 // pred_fallthru
    _
  // Predicated region
  $region30: #{inception_forward.2} parent=0 // pred_check
    _
  $region31: #{inception_forward.2} parent=0 // pred_check_branch
    %1650 = sbr.rel (0) target = $region33
  $region32: #{inception_forward.2} parent=0 // pred_region
    _
  $region33: #{inception_forward.2} parent=0 // pred_fallthru
    _
  // Predicated region
  $region34: #{inception_forward.2} parent=0 // pred_check
    _
  $region35: #{inception_forward.2} parent=0 // pred_check_branch
    %1652 = sbr.rel (0) target = $region37
  $region36: #{inception_forward.2} parent=0 // pred_region
    _
  $region37: #{inception_forward.2} parent=0 // pred_fallthru
    _

</llo_original>
